<compile_context>
chip_gen: v6e
topology: v6e:2x2x1
jax: 0.10.0
libtpu: 0.0.40
codegen_flags: <defaults>
</compile_context>

<pallas_src>
import jax
import jax.numpy as jnp
from jax.experimental import pallas as pl
from jax.experimental.pallas import tpu as pltpu

EPS = 1e-5


# ----------------------------- shared math ---------------------------------
def _bn_train(x, gamma, beta):
    """BatchNorm1d, training mode: batch mean, biased variance, eps=1e-5."""
    mu = jnp.mean(x, axis=0, keepdims=True)
    var = jnp.mean((x - mu) ** 2, axis=0, keepdims=True)
    return (x - mu) * jax.lax.rsqrt(var + EPS) * gamma + beta


def _bn_norm(x):
    """BatchNorm1d normalization only (affine folded into the next Linear)."""
    mu = jnp.mean(x, axis=0, keepdims=True)
    var = jnp.mean((x - mu) ** 2, axis=0, keepdims=True)
    return (x - mu) * jax.lax.rsqrt(var + EPS)


def _prelu(x, a):
    """PReLU with a single shared slope parameter (PyTorch default)."""
    return jnp.where(x >= 0, x, a * x)


# ----------------------------- fused Pallas kernel ---------------------------
def fused_kernel(xb_ref, w1_ref, b1_ref, w2_ref, b2_ref,
                 wdh_ref, bdh_ref, wd2_ref, bd2_ref,
                 a1_ref, ad1_ref,
                 we_ref, be_ref, whc_ref, bhc_ref,
                 dec_ref, haz_ref, common_ref):
    """Single invocation: all block AEs + block hazard heads + mean fusion +
    common encoder + common hazard head.  Blocks are statically unrolled."""
    n_blocks = dec_ref.shape[0]
    H = wd2_ref.shape[1]

    acc = None
    for ix in range(n_blocks):                       # static unroll
        x = xb_ref[ix]                               # (B, d_pad) bf16, zero-padded cols
        a1 = a1_ref[ix]                              # PReLU slopes (SMEM f32 scalars)
        ad1 = ad1_ref[ix]

        # Encoder: Linear(d,H) -> PReLU -> BN(H) (affine folded into next Linear)
        h = jnp.dot(x, w1_ref[ix], preferred_element_type=jnp.float32) + b1_ref[ix]
        h = _prelu(h, a1)
        h_hat = _bn_norm(h)
        enc = jnp.dot(h_hat.astype(jnp.bfloat16), w2_ref[ix],
                      preferred_element_type=jnp.float32) + b2_ref[ix]

        # mean-fusion accumulator stays in registers (no scratch, no carry)
        acc = enc if acc is None else acc + enc

        # shared BN(E) statistics feed both the decoder and the block hazard head
        enc_hat = _bn_norm(enc).astype(jnp.bfloat16)

        # decoder Linear(E,H) and hazard Linear(E,1) fused into one (E, H+1) matmul
        dh = jnp.dot(enc_hat, wdh_ref[ix],
                     preferred_element_type=jnp.float32) + bdh_ref[ix]
        haz_ref[:, ix:ix + 1] = dh[:, H:H + 1]       # direct narrow store

        # Decoder tail: PReLU -> BN(H) (affine folded) -> Linear(H, d_pad)
        d = _prelu(dh[:, :H], ad1)
        d_hat = _bn_norm(d).astype(jnp.bfloat16)
        dec_ref[ix] = (jnp.dot(d_hat, wd2_ref[ix],
                               preferred_element_type=jnp.float32) + bd2_ref[ix])

    # mean fusion + common encoder Linear(E,E) + common hazard BN -> Linear(E,1)
    common = acc * (1.0 / n_blocks)
    common_ref[...] = common
    z = jnp.dot(common.astype(jnp.bfloat16), we_ref[...],
                preferred_element_type=jnp.float32) + be_ref[...]
    z_hat = _bn_norm(z).astype(jnp.bfloat16)
    haz_ref[:, n_blocks:n_blocks + 1] = (
        jnp.dot(z_hat, whc_ref[...], preferred_element_type=jnp.float32)
        + bhc_ref[...])


# ----------------------------- wrapper ---------------------------------------
def _round_up(n, m):
    return ((n + m - 1) // m) * m


def mean_sae_forward(x, blocks, block_params, common_params):
    """Pallas-backed forward of MeanSAEEncodeOnly (fusion='mean')."""
    n_blocks = len(blocks)
    d_list = [len(b) for b in blocks]
    d_pad = _round_up(max(d_list), 16)     # bf16 sublane-friendly; no 128-lane padding
    B = x.shape[0]
    H = block_params[0]["w1"].shape[1]
    E = block_params[0]["w2"].shape[1]
    bf = jnp.bfloat16

    # --- per-block column extraction (static slices, no gather) + zero pad ---
    original_blocks, xb_padded = [], []
    for block in blocks:
        b0 = block[0]
        if list(block) == list(range(b0, b0 + len(block))):
            xb = x[:, b0:b0 + len(block)]                     # contiguous slice
        else:
            xb = jnp.take(x, jnp.array(block), axis=1)        # rare non-contiguous case
        original_blocks.append(xb)
        xb_padded.append(jnp.pad(xb, ((0, 0), (0, d_pad - xb.shape[1]))))
    xb_stack = jnp.stack(xb_padded, axis=0).astype(bf)        # (n_blocks, B, d_pad)

    # --- fold BN affines into the following Linears, pad, stack, cast ---
    w1s, b1s, w2s, b2s, wdhs, bdhs, wd2s, bd2s, a1s, ad1s = ([] for _ in range(10))
    for p, d in zip(block_params, d_list):
        w1s.append(jnp.pad(p["w1"], ((0, d_pad - d), (0, 0))))
        b1s.append(p["b1"])
        # BN(H) affine (g1, be1) -> encoder Linear(H, E)
        w2s.append(p["g1"].reshape(-1, 1) * p["w2"])
        b2s.append(p["be1"] @ p["w2"] + p["b2"])
        # decoder BN(E) affine (gd0, bd0) -> Linear(E, H)
        wd1 = p["gd0"].reshape(-1, 1) * p["wd1"]
        bd1 = p["bd0"] @ p["wd1"] + p["bd1"]
        # block-hazard BN(E) affine (gh, beh) -> Linear(E, 1)
        wh = p["gh"].reshape(-1, 1) * p["wh"]
        bh = p["beh"] @ p["wh"] + p["bh"]
        wdhs.append(jnp.concatenate([wd1, wh], axis=1))       # (E, H+1)
        bdhs.append(jnp.concatenate([bd1, bh], axis=1))       # (1, H+1)
        # decoder BN(H) affine (gd1, bed1) -> Linear(H, d), zero-pad d -> d_pad
        wd2 = p["gd1"].reshape(-1, 1) * p["wd2"]
        bd2 = p["bed1"] @ p["wd2"] + p["bd2"]
        wd2s.append(jnp.pad(wd2, ((0, 0), (0, d_pad - d))))
        bd2s.append(jnp.pad(bd2, ((0, 0), (0, d_pad - d))))
        a1s.append(p["a1"].reshape(()))
        ad1s.append(p["ad1"].reshape(()))

    w1_st = jnp.stack(w1s).astype(bf)
    b1_st = jnp.stack(b1s)
    w2_st = jnp.stack(w2s).astype(bf)
    b2_st = jnp.stack(b2s)
    wdh_st = jnp.stack(wdhs).astype(bf)
    bdh_st = jnp.stack(bdhs)
    wd2_st = jnp.stack(wd2s).astype(bf)
    bd2_st = jnp.stack(bd2s)
    a1_st = jnp.stack(a1s)
    ad1_st = jnp.stack(ad1s)

    cp = common_params
    we = cp["we"].astype(bf)
    be = cp["be"]
    whc = (cp["gh"].reshape(-1, 1) * cp["wh"]).astype(bf)     # fold ghc/behc -> whc/bhc
    bhc = cp["beh"] @ cp["wh"] + cp["bh"]

    vmem = pl.BlockSpec(memory_space=pltpu.MemorySpace.VMEM)
    smem = pl.BlockSpec(memory_space=pltpu.MemorySpace.SMEM)
    in_specs = [vmem] * 9 + [smem, smem] + [vmem] * 4
    out_specs = (vmem, vmem, vmem)
    out_shape = (
        jax.ShapeDtypeStruct((n_blocks, B, d_pad), jnp.float32),   # decoded (padded)
        jax.ShapeDtypeStruct((B, n_blocks + 1), jnp.float32),      # packed hazards
        jax.ShapeDtypeStruct((B, E), jnp.float32),                 # original_common
    )

    dec_pad, haz_slab, common = pl.pallas_call(
        fused_kernel,
        out_shape=out_shape,
        in_specs=in_specs,
        out_specs=out_specs,
    )(xb_stack, w1_st, b1_st, w2_st, b2_st, wdh_st, bdh_st, wd2_st, bd2_st,
      a1_st, ad1_st, we, be, whc, bhc)

    decoded = [dec_pad[ix, :, :d_list[ix]] for ix in range(n_blocks)]
    block_hazards = [haz_slab[:, ix:ix + 1] for ix in range(n_blocks)]
    hazard = haz_slab[:, n_blocks:n_blocks + 1]
    return hazard, original_blocks, decoded, block_hazards, common


# ----------------------------- parameter init --------------------------------
def _linear_params(key, fan_in, fan_out):
    kw, kb = jax.random.split(key)
    bound = 1.0 / (fan_in ** 0.5)
    w = jax.random.uniform(kw, (fan_in, fan_out), jnp.float32, -bound, bound)
    b = jax.random.uniform(kb, (1, fan_out), jnp.float32, -bound, bound)
    return w, b


def _ones(n):
    return jnp.ones((1, n), jnp.float32)


def _zeros(n):
    return jnp.zeros((1, n), jnp.float32)


def init_block_params(key, d, H, E):
    keys = jax.random.split(key, 5)
    w1, b1 = _linear_params(keys[0], d, H)     # encoder Linear(d, H)
    w2, b2 = _linear_params(keys[1], H, E)     # encoder Linear(H, E)
    wd1, bd1 = _linear_params(keys[2], E, H)   # decoder Linear(E, H)
    wd2, bd2 = _linear_params(keys[3], H, d)   # decoder Linear(H, d)
    wh, bh = _linear_params(keys[4], E, 1)     # block hazard Linear(E, 1)
    prelu = jnp.full((1, 1), 0.25, jnp.float32)
    return dict(
        w1=w1, b1=b1, a1=prelu, g1=_ones(H), be1=_zeros(H),
        w2=w2, b2=b2,
        gd0=_ones(E), bd0=_zeros(E),
        wd1=wd1, bd1=bd1, ad1=prelu, gd1=_ones(H), bed1=_zeros(H),
        wd2=wd2, bd2=bd2,
        gh=_ones(E), beh=_zeros(E), wh=wh, bh=bh,
    )


def init_common_params(key, E):
    k1, k2 = jax.random.split(key)
    we, be = _linear_params(k1, E, E)          # common encoder Linear(E, E)
    wh, bh = _linear_params(k2, E, 1)          # common hazard Linear(E, 1)
    return dict(we=we, be=be, gh=_ones(E), beh=_zeros(E), wh=wh, bh=bh)


# ----------------------------- pure-JAX reference ----------------------------
def _block_ae_ref(xb, p):
    h = xb @ p["w1"] + p["b1"]
    h = _prelu(h, p["a1"])
    h = _bn_train(h, p["g1"], p["be1"])
    enc = h @ p["w2"] + p["b2"]
    d = _bn_train(enc, p["gd0"], p["bd0"])
    d = d @ p["wd1"] + p["bd1"]
    d = _prelu(d, p["ad1"])
    d = _bn_train(d, p["gd1"], p["bed1"])
    dec = d @ p["wd2"] + p["bd2"]
    hz = _bn_train(enc, p["gh"], p["beh"]) @ p["wh"] + p["bh"]
    return enc, dec, hz


def mean_sae_forward_ref(x, blocks, block_params, common_params):
    original_blocks = [x[:, jnp.array(block)] for block in blocks]
    outs = [_block_ae_ref(xb, block_params[ix])
            for ix, xb in enumerate(original_blocks)]
    encoded = [o[0] for o in outs]
    decoded = [o[1] for o in outs]
    block_hazards = [o[2] for o in outs]
    common = jnp.mean(jnp.stack(encoded, axis=0), axis=0)
    cp = common_params
    z = common @ cp["we"] + cp["be"]
    z = _bn_train(z, cp["gh"], cp["beh"])
    hazard = z @ cp["wh"] + cp["bh"]
    return hazard, original_blocks, decoded, block_hazards, common


# ----------------------------- main ------------------------------------------
if __name__ == "__main__":
    B = 8                       # batch
    H = 128                     # block_hidden_layer_size
    E = 64                      # block / common embedding_dimension
    F = 40                      # total number of input features
    blocks = [list(range(0, 16)), list(range(16, 28)), list(range(28, 40))]

    key = jax.random.PRNGKey(0)
    kx, kparams = jax.random.split(key)
    x = jax.random.normal(kx, (B, F), jnp.float32)

    pkeys = jax.random.split(kparams, len(blocks) + 1)
    block_params = [init_block_params(pkeys[i], len(blocks[i]), H, E)
                    for i in range(len(blocks))]
    common_params = init_common_params(pkeys[-1], E)

    fwd = jax.jit(lambda xx, bp, cp: mean_sae_forward(xx, blocks, bp, cp))
    out = fwd(x, block_params, common_params)
    jax.block_until_ready(out)
    hazard, original_blocks, decoded, block_hazards, common = out

    # Sanity check against a pure-f32 JAX reference.  Tolerance is slightly
    # loosened vs. the previous all-f32 kernel because weights/activations now
    # take the bf16 MXU path (f32 accumulation).
    ref = mean_sae_forward_ref(x, blocks, block_params, common_params)
    rh, rob, rdec, rbh, rcommon = ref
    TOL = dict(rtol=3e-2, atol=3e-2)
    assert hazard.shape == (B, 1) and common.shape == (B, E)
    assert jnp.allclose(hazard, rh, **TOL)
    assert jnp.allclose(common, rcommon, **TOL)
    for a, b in zip(original_blocks, rob):
        assert a.shape == b.shape and jnp.allclose(a, b)
    for a, b in zip(decoded, rdec):
        assert a.shape == b.shape and jnp.allclose(a, b, **TOL)
    for a, b in zip(block_hazards, rbh):
        assert a.shape == (B, 1) and jnp.allclose(a, b, **TOL)

    print("KERNEL_OK")
</pallas_src>

<mosaic_0001>
module attributes {stable_mosaic.version = 11 : i64} {
  func.func @fused_kernel(%arg0: memref<3x8x16xbf16, #tpu.memory_space<vmem>>, %arg1: memref<3x16x128xbf16, #tpu.memory_space<vmem>>, %arg2: memref<3x1x128xf32, #tpu.memory_space<vmem>>, %arg3: memref<3x128x64xbf16, #tpu.memory_space<vmem>>, %arg4: memref<3x1x64xf32, #tpu.memory_space<vmem>>, %arg5: memref<3x64x129xbf16, #tpu.memory_space<vmem>>, %arg6: memref<3x1x129xf32, #tpu.memory_space<vmem>>, %arg7: memref<3x128x16xbf16, #tpu.memory_space<vmem>>, %arg8: memref<3x1x16xf32, #tpu.memory_space<vmem>>, %arg9: memref<3xf32, #tpu.memory_space<smem>>, %arg10: memref<3xf32, #tpu.memory_space<smem>>, %arg11: memref<64x64xbf16, #tpu.memory_space<vmem>>, %arg12: memref<1x64xf32, #tpu.memory_space<vmem>>, %arg13: memref<64x1xbf16, #tpu.memory_space<vmem>>, %arg14: memref<1x1xf32, #tpu.memory_space<vmem>>, %arg15: memref<3x8x16xf32, #tpu.memory_space<vmem>>, %arg16: memref<8x4xf32, #tpu.memory_space<vmem>>, %arg17: memref<8x64xf32, #tpu.memory_space<vmem>>) attributes {dimension_semantics = [], scalar_prefetch = 0 : i64, scratch_operands = 0 : i64, tpu.core_type = #tpu.core_type<tc>} {
    %c0 = arith.constant 0 : index
    %c0_0 = arith.constant 0 : index
    %c0_1 = arith.constant 0 : index
    %0 = vector.load %arg0[%c0, %c0_0, %c0_1] : memref<3x8x16xbf16, #tpu.memory_space<vmem>>, vector<1x8x16xbf16>
    %1 = vector.shape_cast %0 : vector<1x8x16xbf16> to vector<8x16xbf16>
    %c0_2 = arith.constant 0 : index
    %2 = memref.load %arg9[%c0_2] : memref<3xf32, #tpu.memory_space<smem>>
    %c0_3 = arith.constant 0 : index
    %3 = memref.load %arg10[%c0_3] : memref<3xf32, #tpu.memory_space<smem>>
    %c0_4 = arith.constant 0 : index
    %c0_5 = arith.constant 0 : index
    %c0_6 = arith.constant 0 : index
    %4 = vector.load %arg1[%c0_4, %c0_5, %c0_6] : memref<3x16x128xbf16, #tpu.memory_space<vmem>>, vector<1x16x128xbf16>
    %5 = vector.shape_cast %4 : vector<1x16x128xbf16> to vector<16x128xbf16>
    %cst = arith.constant dense<0.000000e+00> : vector<8x128xf32>
    %6 = tpu.matmul %1, %5, %cst {dimension_numbers = #tpu.dot_dimension_numbers<[1], [0], [0], [1], [0, 0, 1, 1], [], []>} : vector<8x16xbf16>, vector<16x128xbf16>, vector<8x128xf32> -> vector<8x128xf32>
    %c0_7 = arith.constant 0 : index
    %c0_8 = arith.constant 0 : index
    %c0_9 = arith.constant 0 : index
    %7 = vector.load %arg2[%c0_7, %c0_8, %c0_9] : memref<3x1x128xf32, #tpu.memory_space<vmem>>, vector<1x1x128xf32>
    %8 = vector.shape_cast %7 : vector<1x1x128xf32> to vector<1x128xf32>
    %9 = vector.broadcast %8 : vector<1x128xf32> to vector<8x128xf32>
    %10 = arith.addf %6, %9 : vector<8x128xf32>
    %cst_10 = arith.constant 0.000000e+00 : f32
    %11 = vector.broadcast %cst_10 : f32 to vector<8x128xf32>
    %12 = arith.cmpf oge, %10, %11 : vector<8x128xf32>
    %13 = vector.broadcast %2 : f32 to vector<8x128xf32>
    %14 = arith.mulf %13, %10 : vector<8x128xf32>
    %15 = arith.select %12, %10, %14 : vector<8x128xi1>, vector<8x128xf32>
    %cst_11 = arith.constant dense<0.000000e+00> : vector<128xf32>
    %16 = vector.multi_reduction <add>, %15, %cst_11 [0] : vector<8x128xf32> to vector<128xf32>
    %17 = vector.shape_cast %16 : vector<128xf32> to vector<1x128xf32>
    %cst_12 = arith.constant 8.000000e+00 : f32
    %18 = vector.broadcast %cst_12 : f32 to vector<1x128xf32>
    %19 = arith.divf %17, %18 : vector<1x128xf32>
    %20 = vector.broadcast %19 : vector<1x128xf32> to vector<8x128xf32>
    %21 = arith.subf %15, %20 : vector<8x128xf32>
    %22 = arith.mulf %21, %21 : vector<8x128xf32>
    %cst_13 = arith.constant dense<0.000000e+00> : vector<128xf32>
    %23 = vector.multi_reduction <add>, %22, %cst_13 [0] : vector<8x128xf32> to vector<128xf32>
    %24 = vector.shape_cast %23 : vector<128xf32> to vector<1x128xf32>
    %cst_14 = arith.constant 8.000000e+00 : f32
    %25 = vector.broadcast %cst_14 : f32 to vector<1x128xf32>
    %26 = arith.divf %24, %25 : vector<1x128xf32>
    %27 = vector.broadcast %19 : vector<1x128xf32> to vector<8x128xf32>
    %28 = arith.subf %15, %27 : vector<8x128xf32>
    %cst_15 = arith.constant 9.99999974E-6 : f32
    %29 = vector.broadcast %cst_15 : f32 to vector<1x128xf32>
    %30 = arith.addf %26, %29 : vector<1x128xf32>
    %31 = math.rsqrt %30 : vector<1x128xf32>
    %32 = vector.broadcast %31 : vector<1x128xf32> to vector<8x128xf32>
    %33 = arith.mulf %28, %32 : vector<8x128xf32>
    %34 = arith.truncf %33 : vector<8x128xf32> to vector<8x128xbf16>
    %c0_16 = arith.constant 0 : index
    %c0_17 = arith.constant 0 : index
    %c0_18 = arith.constant 0 : index
    %35 = vector.load %arg3[%c0_16, %c0_17, %c0_18] : memref<3x128x64xbf16, #tpu.memory_space<vmem>>, vector<1x128x64xbf16>
    %36 = vector.shape_cast %35 : vector<1x128x64xbf16> to vector<128x64xbf16>
    %cst_19 = arith.constant dense<0.000000e+00> : vector<8x64xf32>
    %37 = tpu.matmul %34, %36, %cst_19 {dimension_numbers = #tpu.dot_dimension_numbers<[1], [0], [0], [1], [0, 0, 1, 1], [], []>} : vector<8x128xbf16>, vector<128x64xbf16>, vector<8x64xf32> -> vector<8x64xf32>
    %c0_20 = arith.constant 0 : index
    %c0_21 = arith.constant 0 : index
    %c0_22 = arith.constant 0 : index
    %38 = vector.load %arg4[%c0_20, %c0_21, %c0_22] : memref<3x1x64xf32, #tpu.memory_space<vmem>>, vector<1x1x64xf32>
    %39 = vector.shape_cast %38 : vector<1x1x64xf32> to vector<1x64xf32>
    %40 = vector.broadcast %39 : vector<1x64xf32> to vector<8x64xf32>
    %41 = arith.addf %37, %40 : vector<8x64xf32>
    %cst_23 = arith.constant dense<0.000000e+00> : vector<64xf32>
    %42 = vector.multi_reduction <add>, %41, %cst_23 [0] : vector<8x64xf32> to vector<64xf32>
    %43 = vector.shape_cast %42 : vector<64xf32> to vector<1x64xf32>
    %cst_24 = arith.constant 8.000000e+00 : f32
    %44 = vector.broadcast %cst_24 : f32 to vector<1x64xf32>
    %45 = arith.divf %43, %44 : vector<1x64xf32>
    %46 = vector.broadcast %45 : vector<1x64xf32> to vector<8x64xf32>
    %47 = arith.subf %41, %46 : vector<8x64xf32>
    %48 = arith.mulf %47, %47 : vector<8x64xf32>
    %cst_25 = arith.constant dense<0.000000e+00> : vector<64xf32>
    %49 = vector.multi_reduction <add>, %48, %cst_25 [0] : vector<8x64xf32> to vector<64xf32>
    %50 = vector.shape_cast %49 : vector<64xf32> to vector<1x64xf32>
    %cst_26 = arith.constant 8.000000e+00 : f32
    %51 = vector.broadcast %cst_26 : f32 to vector<1x64xf32>
    %52 = arith.divf %50, %51 : vector<1x64xf32>
    %53 = vector.broadcast %45 : vector<1x64xf32> to vector<8x64xf32>
    %54 = arith.subf %41, %53 : vector<8x64xf32>
    %cst_27 = arith.constant 9.99999974E-6 : f32
    %55 = vector.broadcast %cst_27 : f32 to vector<1x64xf32>
    %56 = arith.addf %52, %55 : vector<1x64xf32>
    %57 = math.rsqrt %56 : vector<1x64xf32>
    %58 = vector.broadcast %57 : vector<1x64xf32> to vector<8x64xf32>
    %59 = arith.mulf %54, %58 : vector<8x64xf32>
    %60 = arith.truncf %59 : vector<8x64xf32> to vector<8x64xbf16>
    %c0_28 = arith.constant 0 : index
    %c0_29 = arith.constant 0 : index
    %c0_30 = arith.constant 0 : index
    %61 = vector.load %arg5[%c0_28, %c0_29, %c0_30] : memref<3x64x129xbf16, #tpu.memory_space<vmem>>, vector<1x64x129xbf16>
    %62 = vector.shape_cast %61 : vector<1x64x129xbf16> to vector<64x129xbf16>
    %cst_31 = arith.constant dense<0.000000e+00> : vector<8x129xf32>
    %63 = tpu.matmul %60, %62, %cst_31 {dimension_numbers = #tpu.dot_dimension_numbers<[1], [0], [0], [1], [0, 0, 1, 1], [], []>} : vector<8x64xbf16>, vector<64x129xbf16>, vector<8x129xf32> -> vector<8x129xf32>
    %c0_32 = arith.constant 0 : index
    %c0_33 = arith.constant 0 : index
    %c0_34 = arith.constant 0 : index
    %64 = vector.load %arg6[%c0_32, %c0_33, %c0_34] : memref<3x1x129xf32, #tpu.memory_space<vmem>>, vector<1x1x129xf32>
    %65 = vector.shape_cast %64 : vector<1x1x129xf32> to vector<1x129xf32>
    %66 = vector.broadcast %65 : vector<1x129xf32> to vector<8x129xf32>
    %67 = arith.addf %63, %66 : vector<8x129xf32>
    %68 = vector.extract_strided_slice %67 {offsets = [0, 128], sizes = [8, 1], strides = [1, 1]} : vector<8x129xf32> to vector<8x1xf32>
    %c0_35 = arith.constant 0 : index
    %c0_36 = arith.constant 0 : index
    %69 = vector.load %arg16[%c0_35, %c0_36] : memref<8x4xf32, #tpu.memory_space<vmem>>, vector<8x1xf32>
    tpu.vector_store %arg16[%c0_35, %c0_36], %68 {strides = array<i32>} : memref<8x4xf32, #tpu.memory_space<vmem>>, vector<8x1xf32>,
    %70 = vector.extract_strided_slice %67 {offsets = [0, 0], sizes = [8, 128], strides = [1, 1]} : vector<8x129xf32> to vector<8x128xf32>
    %cst_37 = arith.constant 0.000000e+00 : f32
    %71 = vector.broadcast %cst_37 : f32 to vector<8x128xf32>
    %72 = arith.cmpf oge, %70, %71 : vector<8x128xf32>
    %73 = vector.broadcast %3 : f32 to vector<8x128xf32>
    %74 = arith.mulf %73, %70 : vector<8x128xf32>
    %75 = arith.select %72, %70, %74 : vector<8x128xi1>, vector<8x128xf32>
    %cst_38 = arith.constant dense<0.000000e+00> : vector<128xf32>
    %76 = vector.multi_reduction <add>, %75, %cst_38 [0] : vector<8x128xf32> to vector<128xf32>
    %77 = vector.shape_cast %76 : vector<128xf32> to vector<1x128xf32>
    %cst_39 = arith.constant 8.000000e+00 : f32
    %78 = vector.broadcast %cst_39 : f32 to vector<1x128xf32>
    %79 = arith.divf %77, %78 : vector<1x128xf32>
    %80 = vector.broadcast %79 : vector<1x128xf32> to vector<8x128xf32>
    %81 = arith.subf %75, %80 : vector<8x128xf32>
    %82 = arith.mulf %81, %81 : vector<8x128xf32>
    %cst_40 = arith.constant dense<0.000000e+00> : vector<128xf32>
    %83 = vector.multi_reduction <add>, %82, %cst_40 [0] : vector<8x128xf32> to vector<128xf32>
    %84 = vector.shape_cast %83 : vector<128xf32> to vector<1x128xf32>
    %cst_41 = arith.constant 8.000000e+00 : f32
    %85 = vector.broadcast %cst_41 : f32 to vector<1x128xf32>
    %86 = arith.divf %84, %85 : vector<1x128xf32>
    %87 = vector.broadcast %79 : vector<1x128xf32> to vector<8x128xf32>
    %88 = arith.subf %75, %87 : vector<8x128xf32>
    %cst_42 = arith.constant 9.99999974E-6 : f32
    %89 = vector.broadcast %cst_42 : f32 to vector<1x128xf32>
    %90 = arith.addf %86, %89 : vector<1x128xf32>
    %91 = math.rsqrt %90 : vector<1x128xf32>
    %92 = vector.broadcast %91 : vector<1x128xf32> to vector<8x128xf32>
    %93 = arith.mulf %88, %92 : vector<8x128xf32>
    %94 = arith.truncf %93 : vector<8x128xf32> to vector<8x128xbf16>
    %c0_43 = arith.constant 0 : index
    %c0_44 = arith.constant 0 : index
    %c0_45 = arith.constant 0 : index
    %95 = vector.load %arg7[%c0_43, %c0_44, %c0_45] : memref<3x128x16xbf16, #tpu.memory_space<vmem>>, vector<1x128x16xbf16>
    %96 = vector.shape_cast %95 : vector<1x128x16xbf16> to vector<128x16xbf16>
    %cst_46 = arith.constant dense<0.000000e+00> : vector<8x16xf32>
    %97 = tpu.matmul %94, %96, %cst_46 {dimension_numbers = #tpu.dot_dimension_numbers<[1], [0], [0], [1], [0, 0, 1, 1], [], []>} : vector<8x128xbf16>, vector<128x16xbf16>, vector<8x16xf32> -> vector<8x16xf32>
    %c0_47 = arith.constant 0 : index
    %c0_48 = arith.constant 0 : index
    %c0_49 = arith.constant 0 : index
    %98 = vector.load %arg8[%c0_47, %c0_48, %c0_49] : memref<3x1x16xf32, #tpu.memory_space<vmem>>, vector<1x1x16xf32>
    %99 = vector.shape_cast %98 : vector<1x1x16xf32> to vector<1x16xf32>
    %100 = vector.broadcast %99 : vector<1x16xf32> to vector<8x16xf32>
    %101 = arith.addf %97, %100 : vector<8x16xf32>
    %c0_50 = arith.constant 0 : index
    %c0_51 = arith.constant 0 : index
    %c0_52 = arith.constant 0 : index
    %102 = vector.load %arg15[%c0_50, %c0_51, %c0_52] : memref<3x8x16xf32, #tpu.memory_space<vmem>>, vector<1x8x16xf32>
    %103 = vector.shape_cast %102 : vector<1x8x16xf32> to vector<8x16xf32>
    %104 = vector.shape_cast %101 : vector<8x16xf32> to vector<1x8x16xf32>
    tpu.vector_store %arg15[%c0_50, %c0_51, %c0_52], %104 {strides = array<i32>} : memref<3x8x16xf32, #tpu.memory_space<vmem>>, vector<1x8x16xf32>,
    %c1 = arith.constant 1 : index
    %c0_53 = arith.constant 0 : index
    %c0_54 = arith.constant 0 : index
    %105 = vector.load %arg0[%c1, %c0_53, %c0_54] : memref<3x8x16xbf16, #tpu.memory_space<vmem>>, vector<1x8x16xbf16>
    %106 = vector.shape_cast %105 : vector<1x8x16xbf16> to vector<8x16xbf16>
    %c1_55 = arith.constant 1 : index
    %107 = memref.load %arg9[%c1_55] : memref<3xf32, #tpu.memory_space<smem>>
    %c1_56 = arith.constant 1 : index
    %108 = memref.load %arg10[%c1_56] : memref<3xf32, #tpu.memory_space<smem>>
    %c1_57 = arith.constant 1 : index
    %c0_58 = arith.constant 0 : index
    %c0_59 = arith.constant 0 : index
    %109 = vector.load %arg1[%c1_57, %c0_58, %c0_59] : memref<3x16x128xbf16, #tpu.memory_space<vmem>>, vector<1x16x128xbf16>
    %110 = vector.shape_cast %109 : vector<1x16x128xbf16> to vector<16x128xbf16>
    %cst_60 = arith.constant dense<0.000000e+00> : vector<8x128xf32>
    %111 = tpu.matmul %106, %110, %cst_60 {dimension_numbers = #tpu.dot_dimension_numbers<[1], [0], [0], [1], [0, 0, 1, 1], [], []>} : vector<8x16xbf16>, vector<16x128xbf16>, vector<8x128xf32> -> vector<8x128xf32>
    %c1_61 = arith.constant 1 : index
    %c0_62 = arith.constant 0 : index
    %c0_63 = arith.constant 0 : index
    %112 = vector.load %arg2[%c1_61, %c0_62, %c0_63] : memref<3x1x128xf32, #tpu.memory_space<vmem>>, vector<1x1x128xf32>
    %113 = vector.shape_cast %112 : vector<1x1x128xf32> to vector<1x128xf32>
    %114 = vector.broadcast %113 : vector<1x128xf32> to vector<8x128xf32>
    %115 = arith.addf %111, %114 : vector<8x128xf32>
    %cst_64 = arith.constant 0.000000e+00 : f32
    %116 = vector.broadcast %cst_64 : f32 to vector<8x128xf32>
    %117 = arith.cmpf oge, %115, %116 : vector<8x128xf32>
    %118 = vector.broadcast %107 : f32 to vector<8x128xf32>
    %119 = arith.mulf %118, %115 : vector<8x128xf32>
    %120 = arith.select %117, %115, %119 : vector<8x128xi1>, vector<8x128xf32>
    %cst_65 = arith.constant dense<0.000000e+00> : vector<128xf32>
    %121 = vector.multi_reduction <add>, %120, %cst_65 [0] : vector<8x128xf32> to vector<128xf32>
    %122 = vector.shape_cast %121 : vector<128xf32> to vector<1x128xf32>
    %cst_66 = arith.constant 8.000000e+00 : f32
    %123 = vector.broadcast %cst_66 : f32 to vector<1x128xf32>
    %124 = arith.divf %122, %123 : vector<1x128xf32>
    %125 = vector.broadcast %124 : vector<1x128xf32> to vector<8x128xf32>
    %126 = arith.subf %120, %125 : vector<8x128xf32>
    %127 = arith.mulf %126, %126 : vector<8x128xf32>
    %cst_67 = arith.constant dense<0.000000e+00> : vector<128xf32>
    %128 = vector.multi_reduction <add>, %127, %cst_67 [0] : vector<8x128xf32> to vector<128xf32>
    %129 = vector.shape_cast %128 : vector<128xf32> to vector<1x128xf32>
    %cst_68 = arith.constant 8.000000e+00 : f32
    %130 = vector.broadcast %cst_68 : f32 to vector<1x128xf32>
    %131 = arith.divf %129, %130 : vector<1x128xf32>
    %132 = vector.broadcast %124 : vector<1x128xf32> to vector<8x128xf32>
    %133 = arith.subf %120, %132 : vector<8x128xf32>
    %cst_69 = arith.constant 9.99999974E-6 : f32
    %134 = vector.broadcast %cst_69 : f32 to vector<1x128xf32>
    %135 = arith.addf %131, %134 : vector<1x128xf32>
    %136 = math.rsqrt %135 : vector<1x128xf32>
    %137 = vector.broadcast %136 : vector<1x128xf32> to vector<8x128xf32>
    %138 = arith.mulf %133, %137 : vector<8x128xf32>
    %139 = arith.truncf %138 : vector<8x128xf32> to vector<8x128xbf16>
    %c1_70 = arith.constant 1 : index
    %c0_71 = arith.constant 0 : index
    %c0_72 = arith.constant 0 : index
    %140 = vector.load %arg3[%c1_70, %c0_71, %c0_72] : memref<3x128x64xbf16, #tpu.memory_space<vmem>>, vector<1x128x64xbf16>
    %141 = vector.shape_cast %140 : vector<1x128x64xbf16> to vector<128x64xbf16>
    %cst_73 = arith.constant dense<0.000000e+00> : vector<8x64xf32>
    %142 = tpu.matmul %139, %141, %cst_73 {dimension_numbers = #tpu.dot_dimension_numbers<[1], [0], [0], [1], [0, 0, 1, 1], [], []>} : vector<8x128xbf16>, vector<128x64xbf16>, vector<8x64xf32> -> vector<8x64xf32>
    %c1_74 = arith.constant 1 : index
    %c0_75 = arith.constant 0 : index
    %c0_76 = arith.constant 0 : index
    %143 = vector.load %arg4[%c1_74, %c0_75, %c0_76] : memref<3x1x64xf32, #tpu.memory_space<vmem>>, vector<1x1x64xf32>
    %144 = vector.shape_cast %143 : vector<1x1x64xf32> to vector<1x64xf32>
    %145 = vector.broadcast %144 : vector<1x64xf32> to vector<8x64xf32>
    %146 = arith.addf %142, %145 : vector<8x64xf32>
    %147 = arith.addf %41, %146 : vector<8x64xf32>
    %cst_77 = arith.constant dense<0.000000e+00> : vector<64xf32>
    %148 = vector.multi_reduction <add>, %146, %cst_77 [0] : vector<8x64xf32> to vector<64xf32>
    %149 = vector.shape_cast %148 : vector<64xf32> to vector<1x64xf32>
    %cst_78 = arith.constant 8.000000e+00 : f32
    %150 = vector.broadcast %cst_78 : f32 to vector<1x64xf32>
    %151 = arith.divf %149, %150 : vector<1x64xf32>
    %152 = vector.broadcast %151 : vector<1x64xf32> to vector<8x64xf32>
    %153 = arith.subf %146, %152 : vector<8x64xf32>
    %154 = arith.mulf %153, %153 : vector<8x64xf32>
    %cst_79 = arith.constant dense<0.000000e+00> : vector<64xf32>
    %155 = vector.multi_reduction <add>, %154, %cst_79 [0] : vector<8x64xf32> to vector<64xf32>
    %156 = vector.shape_cast %155 : vector<64xf32> to vector<1x64xf32>
    %cst_80 = arith.constant 8.000000e+00 : f32
    %157 = vector.broadcast %cst_80 : f32 to vector<1x64xf32>
    %158 = arith.divf %156, %157 : vector<1x64xf32>
    %159 = vector.broadcast %151 : vector<1x64xf32> to vector<8x64xf32>
    %160 = arith.subf %146, %159 : vector<8x64xf32>
    %cst_81 = arith.constant 9.99999974E-6 : f32
    %161 = vector.broadcast %cst_81 : f32 to vector<1x64xf32>
    %162 = arith.addf %158, %161 : vector<1x64xf32>
    %163 = math.rsqrt %162 : vector<1x64xf32>
    %164 = vector.broadcast %163 : vector<1x64xf32> to vector<8x64xf32>
    %165 = arith.mulf %160, %164 : vector<8x64xf32>
    %166 = arith.truncf %165 : vector<8x64xf32> to vector<8x64xbf16>
    %c1_82 = arith.constant 1 : index
    %c0_83 = arith.constant 0 : index
    %c0_84 = arith.constant 0 : index
    %167 = vector.load %arg5[%c1_82, %c0_83, %c0_84] : memref<3x64x129xbf16, #tpu.memory_space<vmem>>, vector<1x64x129xbf16>
    %168 = vector.shape_cast %167 : vector<1x64x129xbf16> to vector<64x129xbf16>
    %cst_85 = arith.constant dense<0.000000e+00> : vector<8x129xf32>
    %169 = tpu.matmul %166, %168, %cst_85 {dimension_numbers = #tpu.dot_dimension_numbers<[1], [0], [0], [1], [0, 0, 1, 1], [], []>} : vector<8x64xbf16>, vector<64x129xbf16>, vector<8x129xf32> -> vector<8x129xf32>
    %c1_86 = arith.constant 1 : index
    %c0_87 = arith.constant 0 : index
    %c0_88 = arith.constant 0 : index
    %170 = vector.load %arg6[%c1_86, %c0_87, %c0_88] : memref<3x1x129xf32, #tpu.memory_space<vmem>>, vector<1x1x129xf32>
    %171 = vector.shape_cast %170 : vector<1x1x129xf32> to vector<1x129xf32>
    %172 = vector.broadcast %171 : vector<1x129xf32> to vector<8x129xf32>
    %173 = arith.addf %169, %172 : vector<8x129xf32>
    %174 = vector.extract_strided_slice %173 {offsets = [0, 128], sizes = [8, 1], strides = [1, 1]} : vector<8x129xf32> to vector<8x1xf32>
    %c0_89 = arith.constant 0 : index
    %c1_90 = arith.constant 1 : index
    %175 = vector.load %arg16[%c0_89, %c1_90] : memref<8x4xf32, #tpu.memory_space<vmem>>, vector<8x1xf32>
    tpu.vector_store %arg16[%c0_89, %c1_90], %174 {strides = array<i32>} : memref<8x4xf32, #tpu.memory_space<vmem>>, vector<8x1xf32>,
    %176 = vector.extract_strided_slice %173 {offsets = [0, 0], sizes = [8, 128], strides = [1, 1]} : vector<8x129xf32> to vector<8x128xf32>
    %cst_91 = arith.constant 0.000000e+00 : f32
    %177 = vector.broadcast %cst_91 : f32 to vector<8x128xf32>
    %178 = arith.cmpf oge, %176, %177 : vector<8x128xf32>
    %179 = vector.broadcast %108 : f32 to vector<8x128xf32>
    %180 = arith.mulf %179, %176 : vector<8x128xf32>
    %181 = arith.select %178, %176, %180 : vector<8x128xi1>, vector<8x128xf32>
    %cst_92 = arith.constant dense<0.000000e+00> : vector<128xf32>
    %182 = vector.multi_reduction <add>, %181, %cst_92 [0] : vector<8x128xf32> to vector<128xf32>
    %183 = vector.shape_cast %182 : vector<128xf32> to vector<1x128xf32>
    %cst_93 = arith.constant 8.000000e+00 : f32
    %184 = vector.broadcast %cst_93 : f32 to vector<1x128xf32>
    %185 = arith.divf %183, %184 : vector<1x128xf32>
    %186 = vector.broadcast %185 : vector<1x128xf32> to vector<8x128xf32>
    %187 = arith.subf %181, %186 : vector<8x128xf32>
    %188 = arith.mulf %187, %187 : vector<8x128xf32>
    %cst_94 = arith.constant dense<0.000000e+00> : vector<128xf32>
    %189 = vector.multi_reduction <add>, %188, %cst_94 [0] : vector<8x128xf32> to vector<128xf32>
    %190 = vector.shape_cast %189 : vector<128xf32> to vector<1x128xf32>
    %cst_95 = arith.constant 8.000000e+00 : f32
    %191 = vector.broadcast %cst_95 : f32 to vector<1x128xf32>
    %192 = arith.divf %190, %191 : vector<1x128xf32>
    %193 = vector.broadcast %185 : vector<1x128xf32> to vector<8x128xf32>
    %194 = arith.subf %181, %193 : vector<8x128xf32>
    %cst_96 = arith.constant 9.99999974E-6 : f32
    %195 = vector.broadcast %cst_96 : f32 to vector<1x128xf32>
    %196 = arith.addf %192, %195 : vector<1x128xf32>
    %197 = math.rsqrt %196 : vector<1x128xf32>
    %198 = vector.broadcast %197 : vector<1x128xf32> to vector<8x128xf32>
    %199 = arith.mulf %194, %198 : vector<8x128xf32>
    %200 = arith.truncf %199 : vector<8x128xf32> to vector<8x128xbf16>
    %c1_97 = arith.constant 1 : index
    %c0_98 = arith.constant 0 : index
    %c0_99 = arith.constant 0 : index
    %201 = vector.load %arg7[%c1_97, %c0_98, %c0_99] : memref<3x128x16xbf16, #tpu.memory_space<vmem>>, vector<1x128x16xbf16>
    %202 = vector.shape_cast %201 : vector<1x128x16xbf16> to vector<128x16xbf16>
    %cst_100 = arith.constant dense<0.000000e+00> : vector<8x16xf32>
    %203 = tpu.matmul %200, %202, %cst_100 {dimension_numbers = #tpu.dot_dimension_numbers<[1], [0], [0], [1], [0, 0, 1, 1], [], []>} : vector<8x128xbf16>, vector<128x16xbf16>, vector<8x16xf32> -> vector<8x16xf32>
    %c1_101 = arith.constant 1 : index
    %c0_102 = arith.constant 0 : index
    %c0_103 = arith.constant 0 : index
    %204 = vector.load %arg8[%c1_101, %c0_102, %c0_103] : memref<3x1x16xf32, #tpu.memory_space<vmem>>, vector<1x1x16xf32>
    %205 = vector.shape_cast %204 : vector<1x1x16xf32> to vector<1x16xf32>
    %206 = vector.broadcast %205 : vector<1x16xf32> to vector<8x16xf32>
    %207 = arith.addf %203, %206 : vector<8x16xf32>
    %c1_104 = arith.constant 1 : index
    %c0_105 = arith.constant 0 : index
    %c0_106 = arith.constant 0 : index
    %208 = vector.load %arg15[%c1_104, %c0_105, %c0_106] : memref<3x8x16xf32, #tpu.memory_space<vmem>>, vector<1x8x16xf32>
    %209 = vector.shape_cast %208 : vector<1x8x16xf32> to vector<8x16xf32>
    %210 = vector.shape_cast %207 : vector<8x16xf32> to vector<1x8x16xf32>
    tpu.vector_store %arg15[%c1_104, %c0_105, %c0_106], %210 {strides = array<i32>} : memref<3x8x16xf32, #tpu.memory_space<vmem>>, vector<1x8x16xf32>,
    %c2 = arith.constant 2 : index
    %c0_107 = arith.constant 0 : index
    %c0_108 = arith.constant 0 : index
    %211 = vector.load %arg0[%c2, %c0_107, %c0_108] : memref<3x8x16xbf16, #tpu.memory_space<vmem>>, vector<1x8x16xbf16>
    %212 = vector.shape_cast %211 : vector<1x8x16xbf16> to vector<8x16xbf16>
    %c2_109 = arith.constant 2 : index
    %213 = memref.load %arg9[%c2_109] : memref<3xf32, #tpu.memory_space<smem>>
    %c2_110 = arith.constant 2 : index
    %214 = memref.load %arg10[%c2_110] : memref<3xf32, #tpu.memory_space<smem>>
    %c2_111 = arith.constant 2 : index
    %c0_112 = arith.constant 0 : index
    %c0_113 = arith.constant 0 : index
    %215 = vector.load %arg1[%c2_111, %c0_112, %c0_113] : memref<3x16x128xbf16, #tpu.memory_space<vmem>>, vector<1x16x128xbf16>
    %216 = vector.shape_cast %215 : vector<1x16x128xbf16> to vector<16x128xbf16>
    %cst_114 = arith.constant dense<0.000000e+00> : vector<8x128xf32>
    %217 = tpu.matmul %212, %216, %cst_114 {dimension_numbers = #tpu.dot_dimension_numbers<[1], [0], [0], [1], [0, 0, 1, 1], [], []>} : vector<8x16xbf16>, vector<16x128xbf16>, vector<8x128xf32> -> vector<8x128xf32>
    %c2_115 = arith.constant 2 : index
    %c0_116 = arith.constant 0 : index
    %c0_117 = arith.constant 0 : index
    %218 = vector.load %arg2[%c2_115, %c0_116, %c0_117] : memref<3x1x128xf32, #tpu.memory_space<vmem>>, vector<1x1x128xf32>
    %219 = vector.shape_cast %218 : vector<1x1x128xf32> to vector<1x128xf32>
    %220 = vector.broadcast %219 : vector<1x128xf32> to vector<8x128xf32>
    %221 = arith.addf %217, %220 : vector<8x128xf32>
    %cst_118 = arith.constant 0.000000e+00 : f32
    %222 = vector.broadcast %cst_118 : f32 to vector<8x128xf32>
    %223 = arith.cmpf oge, %221, %222 : vector<8x128xf32>
    %224 = vector.broadcast %213 : f32 to vector<8x128xf32>
    %225 = arith.mulf %224, %221 : vector<8x128xf32>
    %226 = arith.select %223, %221, %225 : vector<8x128xi1>, vector<8x128xf32>
    %cst_119 = arith.constant dense<0.000000e+00> : vector<128xf32>
    %227 = vector.multi_reduction <add>, %226, %cst_119 [0] : vector<8x128xf32> to vector<128xf32>
    %228 = vector.shape_cast %227 : vector<128xf32> to vector<1x128xf32>
    %cst_120 = arith.constant 8.000000e+00 : f32
    %229 = vector.broadcast %cst_120 : f32 to vector<1x128xf32>
    %230 = arith.divf %228, %229 : vector<1x128xf32>
    %231 = vector.broadcast %230 : vector<1x128xf32> to vector<8x128xf32>
    %232 = arith.subf %226, %231 : vector<8x128xf32>
    %233 = arith.mulf %232, %232 : vector<8x128xf32>
    %cst_121 = arith.constant dense<0.000000e+00> : vector<128xf32>
    %234 = vector.multi_reduction <add>, %233, %cst_121 [0] : vector<8x128xf32> to vector<128xf32>
    %235 = vector.shape_cast %234 : vector<128xf32> to vector<1x128xf32>
    %cst_122 = arith.constant 8.000000e+00 : f32
    %236 = vector.broadcast %cst_122 : f32 to vector<1x128xf32>
    %237 = arith.divf %235, %236 : vector<1x128xf32>
    %238 = vector.broadcast %230 : vector<1x128xf32> to vector<8x128xf32>
    %239 = arith.subf %226, %238 : vector<8x128xf32>
    %cst_123 = arith.constant 9.99999974E-6 : f32
    %240 = vector.broadcast %cst_123 : f32 to vector<1x128xf32>
    %241 = arith.addf %237, %240 : vector<1x128xf32>
    %242 = math.rsqrt %241 : vector<1x128xf32>
    %243 = vector.broadcast %242 : vector<1x128xf32> to vector<8x128xf32>
    %244 = arith.mulf %239, %243 : vector<8x128xf32>
    %245 = arith.truncf %244 : vector<8x128xf32> to vector<8x128xbf16>
    %c2_124 = arith.constant 2 : index
    %c0_125 = arith.constant 0 : index
    %c0_126 = arith.constant 0 : index
    %246 = vector.load %arg3[%c2_124, %c0_125, %c0_126] : memref<3x128x64xbf16, #tpu.memory_space<vmem>>, vector<1x128x64xbf16>
    %247 = vector.shape_cast %246 : vector<1x128x64xbf16> to vector<128x64xbf16>
    %cst_127 = arith.constant dense<0.000000e+00> : vector<8x64xf32>
    %248 = tpu.matmul %245, %247, %cst_127 {dimension_numbers = #tpu.dot_dimension_numbers<[1], [0], [0], [1], [0, 0, 1, 1], [], []>} : vector<8x128xbf16>, vector<128x64xbf16>, vector<8x64xf32> -> vector<8x64xf32>
    %c2_128 = arith.constant 2 : index
    %c0_129 = arith.constant 0 : index
    %c0_130 = arith.constant 0 : index
    %249 = vector.load %arg4[%c2_128, %c0_129, %c0_130] : memref<3x1x64xf32, #tpu.memory_space<vmem>>, vector<1x1x64xf32>
    %250 = vector.shape_cast %249 : vector<1x1x64xf32> to vector<1x64xf32>
    %251 = vector.broadcast %250 : vector<1x64xf32> to vector<8x64xf32>
    %252 = arith.addf %248, %251 : vector<8x64xf32>
    %253 = arith.addf %147, %252 : vector<8x64xf32>
    %cst_131 = arith.constant dense<0.000000e+00> : vector<64xf32>
    %254 = vector.multi_reduction <add>, %252, %cst_131 [0] : vector<8x64xf32> to vector<64xf32>
    %255 = vector.shape_cast %254 : vector<64xf32> to vector<1x64xf32>
    %cst_132 = arith.constant 8.000000e+00 : f32
    %256 = vector.broadcast %cst_132 : f32 to vector<1x64xf32>
    %257 = arith.divf %255, %256 : vector<1x64xf32>
    %258 = vector.broadcast %257 : vector<1x64xf32> to vector<8x64xf32>
    %259 = arith.subf %252, %258 : vector<8x64xf32>
    %260 = arith.mulf %259, %259 : vector<8x64xf32>
    %cst_133 = arith.constant dense<0.000000e+00> : vector<64xf32>
    %261 = vector.multi_reduction <add>, %260, %cst_133 [0] : vector<8x64xf32> to vector<64xf32>
    %262 = vector.shape_cast %261 : vector<64xf32> to vector<1x64xf32>
    %cst_134 = arith.constant 8.000000e+00 : f32
    %263 = vector.broadcast %cst_134 : f32 to vector<1x64xf32>
    %264 = arith.divf %262, %263 : vector<1x64xf32>
    %265 = vector.broadcast %257 : vector<1x64xf32> to vector<8x64xf32>
    %266 = arith.subf %252, %265 : vector<8x64xf32>
    %cst_135 = arith.constant 9.99999974E-6 : f32
    %267 = vector.broadcast %cst_135 : f32 to vector<1x64xf32>
    %268 = arith.addf %264, %267 : vector<1x64xf32>
    %269 = math.rsqrt %268 : vector<1x64xf32>
    %270 = vector.broadcast %269 : vector<1x64xf32> to vector<8x64xf32>
    %271 = arith.mulf %266, %270 : vector<8x64xf32>
    %272 = arith.truncf %271 : vector<8x64xf32> to vector<8x64xbf16>
    %c2_136 = arith.constant 2 : index
    %c0_137 = arith.constant 0 : index
    %c0_138 = arith.constant 0 : index
    %273 = vector.load %arg5[%c2_136, %c0_137, %c0_138] : memref<3x64x129xbf16, #tpu.memory_space<vmem>>, vector<1x64x129xbf16>
    %274 = vector.shape_cast %273 : vector<1x64x129xbf16> to vector<64x129xbf16>
    %cst_139 = arith.constant dense<0.000000e+00> : vector<8x129xf32>
    %275 = tpu.matmul %272, %274, %cst_139 {dimension_numbers = #tpu.dot_dimension_numbers<[1], [0], [0], [1], [0, 0, 1, 1], [], []>} : vector<8x64xbf16>, vector<64x129xbf16>, vector<8x129xf32> -> vector<8x129xf32>
    %c2_140 = arith.constant 2 : index
    %c0_141 = arith.constant 0 : index
    %c0_142 = arith.constant 0 : index
    %276 = vector.load %arg6[%c2_140, %c0_141, %c0_142] : memref<3x1x129xf32, #tpu.memory_space<vmem>>, vector<1x1x129xf32>
    %277 = vector.shape_cast %276 : vector<1x1x129xf32> to vector<1x129xf32>
    %278 = vector.broadcast %277 : vector<1x129xf32> to vector<8x129xf32>
    %279 = arith.addf %275, %278 : vector<8x129xf32>
    %280 = vector.extract_strided_slice %279 {offsets = [0, 128], sizes = [8, 1], strides = [1, 1]} : vector<8x129xf32> to vector<8x1xf32>
    %c0_143 = arith.constant 0 : index
    %c2_144 = arith.constant 2 : index
    %281 = vector.load %arg16[%c0_143, %c2_144] : memref<8x4xf32, #tpu.memory_space<vmem>>, vector<8x1xf32>
    tpu.vector_store %arg16[%c0_143, %c2_144], %280 {strides = array<i32>} : memref<8x4xf32, #tpu.memory_space<vmem>>, vector<8x1xf32>,
    %282 = vector.extract_strided_slice %279 {offsets = [0, 0], sizes = [8, 128], strides = [1, 1]} : vector<8x129xf32> to vector<8x128xf32>
    %cst_145 = arith.constant 0.000000e+00 : f32
    %283 = vector.broadcast %cst_145 : f32 to vector<8x128xf32>
    %284 = arith.cmpf oge, %282, %283 : vector<8x128xf32>
    %285 = vector.broadcast %214 : f32 to vector<8x128xf32>
    %286 = arith.mulf %285, %282 : vector<8x128xf32>
    %287 = arith.select %284, %282, %286 : vector<8x128xi1>, vector<8x128xf32>
    %cst_146 = arith.constant dense<0.000000e+00> : vector<128xf32>
    %288 = vector.multi_reduction <add>, %287, %cst_146 [0] : vector<8x128xf32> to vector<128xf32>
    %289 = vector.shape_cast %288 : vector<128xf32> to vector<1x128xf32>
    %cst_147 = arith.constant 8.000000e+00 : f32
    %290 = vector.broadcast %cst_147 : f32 to vector<1x128xf32>
    %291 = arith.divf %289, %290 : vector<1x128xf32>
    %292 = vector.broadcast %291 : vector<1x128xf32> to vector<8x128xf32>
    %293 = arith.subf %287, %292 : vector<8x128xf32>
    %294 = arith.mulf %293, %293 : vector<8x128xf32>
    %cst_148 = arith.constant dense<0.000000e+00> : vector<128xf32>
    %295 = vector.multi_reduction <add>, %294, %cst_148 [0] : vector<8x128xf32> to vector<128xf32>
    %296 = vector.shape_cast %295 : vector<128xf32> to vector<1x128xf32>
    %cst_149 = arith.constant 8.000000e+00 : f32
    %297 = vector.broadcast %cst_149 : f32 to vector<1x128xf32>
    %298 = arith.divf %296, %297 : vector<1x128xf32>
    %299 = vector.broadcast %291 : vector<1x128xf32> to vector<8x128xf32>
    %300 = arith.subf %287, %299 : vector<8x128xf32>
    %cst_150 = arith.constant 9.99999974E-6 : f32
    %301 = vector.broadcast %cst_150 : f32 to vector<1x128xf32>
    %302 = arith.addf %298, %301 : vector<1x128xf32>
    %303 = math.rsqrt %302 : vector<1x128xf32>
    %304 = vector.broadcast %303 : vector<1x128xf32> to vector<8x128xf32>
    %305 = arith.mulf %300, %304 : vector<8x128xf32>
    %306 = arith.truncf %305 : vector<8x128xf32> to vector<8x128xbf16>
    %c2_151 = arith.constant 2 : index
    %c0_152 = arith.constant 0 : index
    %c0_153 = arith.constant 0 : index
    %307 = vector.load %arg7[%c2_151, %c0_152, %c0_153] : memref<3x128x16xbf16, #tpu.memory_space<vmem>>, vector<1x128x16xbf16>
    %308 = vector.shape_cast %307 : vector<1x128x16xbf16> to vector<128x16xbf16>
    %cst_154 = arith.constant dense<0.000000e+00> : vector<8x16xf32>
    %309 = tpu.matmul %306, %308, %cst_154 {dimension_numbers = #tpu.dot_dimension_numbers<[1], [0], [0], [1], [0, 0, 1, 1], [], []>} : vector<8x128xbf16>, vector<128x16xbf16>, vector<8x16xf32> -> vector<8x16xf32>
    %c2_155 = arith.constant 2 : index
    %c0_156 = arith.constant 0 : index
    %c0_157 = arith.constant 0 : index
    %310 = vector.load %arg8[%c2_155, %c0_156, %c0_157] : memref<3x1x16xf32, #tpu.memory_space<vmem>>, vector<1x1x16xf32>
    %311 = vector.shape_cast %310 : vector<1x1x16xf32> to vector<1x16xf32>
    %312 = vector.broadcast %311 : vector<1x16xf32> to vector<8x16xf32>
    %313 = arith.addf %309, %312 : vector<8x16xf32>
    %c2_158 = arith.constant 2 : index
    %c0_159 = arith.constant 0 : index
    %c0_160 = arith.constant 0 : index
    %314 = vector.load %arg15[%c2_158, %c0_159, %c0_160] : memref<3x8x16xf32, #tpu.memory_space<vmem>>, vector<1x8x16xf32>
    %315 = vector.shape_cast %314 : vector<1x8x16xf32> to vector<8x16xf32>
    %316 = vector.shape_cast %313 : vector<8x16xf32> to vector<1x8x16xf32>
    tpu.vector_store %arg15[%c2_158, %c0_159, %c0_160], %316 {strides = array<i32>} : memref<3x8x16xf32, #tpu.memory_space<vmem>>, vector<1x8x16xf32>,
    %cst_161 = arith.constant 0.333333343 : f32
    %317 = vector.broadcast %cst_161 : f32 to vector<8x64xf32>
    %318 = arith.mulf %253, %317 : vector<8x64xf32>
    %c0_162 = arith.constant 0 : index
    %c0_163 = arith.constant 0 : index
    %319 = vector.load %arg17[%c0_162, %c0_163] : memref<8x64xf32, #tpu.memory_space<vmem>>, vector<8x64xf32>
    tpu.vector_store %arg17[%c0_162, %c0_163], %318 {strides = array<i32>} : memref<8x64xf32, #tpu.memory_space<vmem>>, vector<8x64xf32>,
    %320 = arith.truncf %318 : vector<8x64xf32> to vector<8x64xbf16>
    %c0_164 = arith.constant 0 : index
    %c0_165 = arith.constant 0 : index
    %321 = vector.load %arg11[%c0_164, %c0_165] : memref<64x64xbf16, #tpu.memory_space<vmem>>, vector<64x64xbf16>
    %cst_166 = arith.constant dense<0.000000e+00> : vector<8x64xf32>
    %322 = tpu.matmul %320, %321, %cst_166 {dimension_numbers = #tpu.dot_dimension_numbers<[1], [0], [0], [1], [0, 0, 1, 1], [], []>} : vector<8x64xbf16>, vector<64x64xbf16>, vector<8x64xf32> -> vector<8x64xf32>
    %c0_167 = arith.constant 0 : index
    %c0_168 = arith.constant 0 : index
    %323 = vector.load %arg12[%c0_167, %c0_168] : memref<1x64xf32, #tpu.memory_space<vmem>>, vector<1x64xf32>
    %324 = vector.broadcast %323 : vector<1x64xf32> to vector<8x64xf32>
    %325 = arith.addf %322, %324 : vector<8x64xf32>
    %cst_169 = arith.constant dense<0.000000e+00> : vector<64xf32>
    %326 = vector.multi_reduction <add>, %325, %cst_169 [0] : vector<8x64xf32> to vector<64xf32>
    %327 = vector.shape_cast %326 : vector<64xf32> to vector<1x64xf32>
    %cst_170 = arith.constant 8.000000e+00 : f32
    %328 = vector.broadcast %cst_170 : f32 to vector<1x64xf32>
    %329 = arith.divf %327, %328 : vector<1x64xf32>
    %330 = vector.broadcast %329 : vector<1x64xf32> to vector<8x64xf32>
    %331 = arith.subf %325, %330 : vector<8x64xf32>
    %332 = arith.mulf %331, %331 : vector<8x64xf32>
    %cst_171 = arith.constant dense<0.000000e+00> : vector<64xf32>
    %333 = vector.multi_reduction <add>, %332, %cst_171 [0] : vector<8x64xf32> to vector<64xf32>
    %334 = vector.shape_cast %333 : vector<64xf32> to vector<1x64xf32>
    %cst_172 = arith.constant 8.000000e+00 : f32
    %335 = vector.broadcast %cst_172 : f32 to vector<1x64xf32>
    %336 = arith.divf %334, %335 : vector<1x64xf32>
    %337 = vector.broadcast %329 : vector<1x64xf32> to vector<8x64xf32>
    %338 = arith.subf %325, %337 : vector<8x64xf32>
    %cst_173 = arith.constant 9.99999974E-6 : f32
    %339 = vector.broadcast %cst_173 : f32 to vector<1x64xf32>
    %340 = arith.addf %336, %339 : vector<1x64xf32>
    %341 = math.rsqrt %340 : vector<1x64xf32>
    %342 = vector.broadcast %341 : vector<1x64xf32> to vector<8x64xf32>
    %343 = arith.mulf %338, %342 : vector<8x64xf32>
    %344 = arith.truncf %343 : vector<8x64xf32> to vector<8x64xbf16>
    %c0_174 = arith.constant 0 : index
    %c0_175 = arith.constant 0 : index
    %345 = vector.load %arg13[%c0_174, %c0_175] : memref<64x1xbf16, #tpu.memory_space<vmem>>, vector<64x1xbf16>
    %cst_176 = arith.constant dense<0.000000e+00> : vector<8x1xf32>
    %346 = tpu.matmul %344, %345, %cst_176 {dimension_numbers = #tpu.dot_dimension_numbers<[1], [0], [0], [1], [0, 0, 1, 1], [], []>} : vector<8x64xbf16>, vector<64x1xbf16>, vector<8x1xf32> -> vector<8x1xf32>
    %c0_177 = arith.constant 0 : index
    %c0_178 = arith.constant 0 : index
    %347 = vector.load %arg14[%c0_177, %c0_178] : memref<1x1xf32, #tpu.memory_space<vmem>>, vector<1x1xf32>
    %348 = vector.broadcast %347 : vector<1x1xf32> to vector<8x1xf32>
    %349 = arith.addf %346, %348 : vector<8x1xf32>
    %c0_179 = arith.constant 0 : index
    %c3 = arith.constant 3 : index
    %350 = vector.load %arg16[%c0_179, %c3] : memref<8x4xf32, #tpu.memory_space<vmem>>, vector<8x1xf32>
    tpu.vector_store %arg16[%c0_179, %c3], %349 {strides = array<i32>} : memref<8x4xf32, #tpu.memory_space<vmem>>, vector<8x1xf32>,
    return
  }
}

</mosaic_0001>

<llo_original>
// kernel: _lambda_.1
$region0: #{_lambda_.1}
  #allocation0 [shape = 'u32[]', space=smem, size = 0x4, offset = 0x4, fixed_abs, tag = 'smem constant byte address 0x4 - core index']
  #allocation1 [shape = 'u32[144,128]{1,0:T(1,128)}', space=vmem, size = 0x12000, scoped, tag = 'internal scratch']
  #allocation2 [shape = 'f32[1,1]{1,0:T(1,128)S(1)}', space=vmem, size = 0x200, scoped, tag = 'scoped memory for _lambda_.1']
  %s0 = inlined_call_operand.vmem [shape: bf16[3,8,16], index: 0, kind: input, shape index: {}]
  %s1 = inlined_call_operand.vmem [shape: bf16[3,16,128], index: 1, kind: input, shape index: {}]
  %s2 = inlined_call_operand.vmem [shape: f32[3,1,128], index: 2, kind: input, shape index: {}]
  %s3 = inlined_call_operand.vmem [shape: bf16[3,128,64], index: 3, kind: input, shape index: {}]
  %s4 = inlined_call_operand.vmem [shape: f32[3,1,64], index: 4, kind: input, shape index: {}]
  %s5 = inlined_call_operand.vmem [shape: bf16[3,64,129], index: 5, kind: input, shape index: {}]
  %s6 = inlined_call_operand.vmem [shape: f32[3,1,129], index: 6, kind: input, shape index: {}]
  %s7 = inlined_call_operand.vmem [shape: bf16[3,128,16], index: 7, kind: input, shape index: {}]
  %s8 = inlined_call_operand.vmem [shape: f32[3,1,16], index: 8, kind: input, shape index: {}]
  %s9 = inlined_call_operand.vmem [shape: f32[3], index: 9, kind: input, shape index: {}]
  %s10 = inlined_call_operand.vmem [shape: f32[3], index: 10, kind: input, shape index: {}]
  %s11 = inlined_call_operand.vmem [shape: bf16[64,64], index: 11, kind: input, shape index: {}]
  %s12 = inlined_call_operand.vmem [shape: f32[1,64], index: 12, kind: input, shape index: {}]
  %s13 = inlined_call_operand.vmem [shape: bf16[64,1], index: 13, kind: input, shape index: {}]
  %s14 = inlined_call_operand.<no memory space> [shape: f32[1,1], index: 14, kind: input, shape index: {}]
  %s15 = inlined_call_operand.vmem [shape: f32[3,8,16], index: 15, kind: output, shape index: {0}]
  %s16 = inlined_call_operand.vmem [shape: f32[8,4], index: 16, kind: output, shape index: {1}]
  %s17 = inlined_call_operand.hbm [shape: f32[8,64], index: 17, kind: output, shape index: {2}]
  %18 = xla_tuple %s15, %s16, %s17
  %s19 = sld [smem:[#allocation0]]
  $region94: #{_lambda_.1} parent=0
    _
  %s21 = ssub.s32 1, %s19
  %s22 = scalar_select 0, %s21, %s19
  %v23 = vstv %s14
  %24 = vst [vmem:[#allocation2] sm:$0x1] %v23
  $region1: #{_lambda_.1} parent=0
    #allocation3 [shape = 'u8[512]{0}', space=smem, size = 0x200, scoped, tag = 'input window, operand 9, single buffered']
    #allocation4 [shape = 's32[1]{0}', space=sflag, size = 0x4, scoped, tag = 'scoped memory for _lambda_.1']
    #allocation5 [shape = 's32[1]{0}', space=sflag, size = 0x4, scoped, tag = 'scoped memory for _lambda_.1']
    #allocation6 [shape = 'u8[512]{0}', space=smem, size = 0x200, scoped, tag = 'input window, operand 10, single buffered']
    #allocation7 [shape = 's32[1]{0}', space=sflag, size = 0x4, scoped, tag = 'scoped memory for _lambda_.1']
    #allocation8 [shape = 'u8[4096]{0}', space=vmem, size = 0x1000, scoped, tag = 'output window, operand 2, single buffered']
    %25 = vsyncpa [#allocation5], 0
    %26 = vsyncpa [#allocation7], 0
    %27 = vsyncpa [#allocation4], 0
    // Predicated region
    $region2: #{_lambda_.1} parent=1 // pred_check
      _
    $region3: #{_lambda_.1} parent=1 // pred_check_branch
      %29 = sbr.rel (0) target = $region5
    $region4: #{_lambda_.1} parent=1 // pred_region
      _
    $region5: #{_lambda_.1} parent=1 // pred_fallthru
      _
    // Predicated region
    $region6: #{_lambda_.1} parent=1 // pred_check
      _
    $region7: #{_lambda_.1} parent=1 // pred_check_branch
      %31 = sbr.rel (0) target = $region9
    $region8: #{_lambda_.1} parent=1 // pred_region
      _
    $region9: #{_lambda_.1} parent=1 // pred_fallthru
      _
    // Predicated region
    $region10: #{_lambda_.1} parent=1 // pred_check
      _
    $region11: #{_lambda_.1} parent=1 // pred_check_branch
      %33 = sbr.rel (0) target = $region13
    $region12: #{_lambda_.1} parent=1 // pred_region
      _
    $region13: #{_lambda_.1} parent=1 // pred_fallthru
      _
    // Predicated region
    $region14: #{_lambda_.1} parent=1 // pred_check
      _
    $region15: #{_lambda_.1} parent=1 // pred_check_branch
      %35 = sbr.rel (0) target = $region17
    $region16: #{_lambda_.1} parent=1 // pred_region
      _
    $region17: #{_lambda_.1} parent=1 // pred_fallthru
      _
    // Predicated region
    $region18: #{_lambda_.1} parent=1 // pred_check
      _
    $region19: #{_lambda_.1} parent=1 // pred_check_branch
      %37 = sbr.rel (0) target = $region21
    $region20: #{_lambda_.1} parent=1 // pred_region
      _
    $region21: #{_lambda_.1} parent=1 // pred_fallthru
      _
    // Predicated region
    $region22: #{_lambda_.1} parent=1 // pred_check
      _
    $region23: #{_lambda_.1} parent=1 // pred_check_branch
      %39 = sbr.rel (0) target = $region25
    $region24: #{_lambda_.1} parent=1 // pred_region
      _
    $region25: #{_lambda_.1} parent=1 // pred_fallthru
      _
    // Predicated region
    $region26: #{_lambda_.1} parent=1 // pred_check
      _
    $region27: #{_lambda_.1} parent=1 // pred_check_branch
      %41 = sbr.rel (0) target = $region29
    $region28: #{_lambda_.1} parent=1 // pred_region
      _
    $region29: #{_lambda_.1} parent=1 // pred_fallthru
      _
    // Predicated region
    $region30: #{_lambda_.1} parent=1 // pred_check
      _
    $region31: #{_lambda_.1} parent=1 // pred_check_branch
      %43 = sbr.rel (0) target = $region33
    $region32: #{_lambda_.1} parent=1 // pred_region
      _
    $region33: #{_lambda_.1} parent=1 // pred_fallthru
      _
    // Predicated region
    $region34: #{_lambda_.1} parent=1 // pred_check
      _
    $region35: #{_lambda_.1} parent=1 // pred_check_branch
      %45 = sbr.rel (0) target = $region37
    $region36: #{_lambda_.1} parent=1 // pred_region
      _
    $region37: #{_lambda_.1} parent=1 // pred_fallthru
      _
    // Predicated region
    $region38: #{_lambda_.1} parent=1 // pred_check
      _
    $region39: #{_lambda_.1} parent=1 // pred_check_branch
      %47 = sbr.rel (0) target = $region41
    $region40: #{_lambda_.1} parent=1 // pred_region
      %s49 = ssub.s32 16, 16
      %50 = vsyncadd [#allocation5], %s49
      %s52 = sshll.u32 %s9, 4
      %s53 = int_to_ptr.vmem [resolvable:$true] %s52
      %55 = dma.vmem_to_smem %s53, 16, [#allocation3], [#allocation5]
    $region41: #{_lambda_.1} parent=1 // pred_fallthru
      _
    // Predicated region
    $region42: #{_lambda_.1} parent=1 // pred_check
      _
    $region43: #{_lambda_.1} parent=1 // pred_check_branch
      %57 = sbr.rel (0) target = $region45
    $region44: #{_lambda_.1} parent=1 // pred_region
      %s59 = ssub.s32 16, 16
      %60 = vsyncadd [#allocation7], %s59
      %s62 = sshll.u32 %s10, 4
      %s63 = int_to_ptr.vmem [resolvable:$true] %s62
      %65 = dma.vmem_to_smem %s63, 16, [#allocation6], [#allocation7]
    $region45: #{_lambda_.1} parent=1 // pred_fallthru
      _
    // Predicated region
    $region46: #{_lambda_.1} parent=1 // pred_check
      _
    $region47: #{_lambda_.1} parent=1 // pred_check_branch
      %67 = sbr.rel (0) target = $region49
    $region48: #{_lambda_.1} parent=1 // pred_region
      _
    $region49: #{_lambda_.1} parent=1 // pred_fallthru
      _
    // Predicated region
    $region50: #{_lambda_.1} parent=1 // pred_check
      _
    $region51: #{_lambda_.1} parent=1 // pred_check_branch
      %69 = sbr.rel (0) target = $region53
    $region52: #{_lambda_.1} parent=1 // pred_region
      _
    $region53: #{_lambda_.1} parent=1 // pred_fallthru
      _
    // Predicated region
    $region54: #{_lambda_.1} parent=1 // pred_check
      _
    $region55: #{_lambda_.1} parent=1 // pred_check_branch
      %71 = sbr.rel (0) target = $region57
    $region56: #{_lambda_.1} parent=1 // pred_region
      _
    $region57: #{_lambda_.1} parent=1 // pred_fallthru
      _
    // Predicated region
    $region58: #{_lambda_.1} parent=1 // pred_check
      _
    $region59: #{_lambda_.1} parent=1 // pred_check_branch
      %73 = sbr.rel (0) target = $region61
    $region60: #{_lambda_.1} parent=1 // pred_region
      _
    $region61: #{_lambda_.1} parent=1 // pred_fallthru
      _
    // Predicated region
    $region62: #{_lambda_.1} parent=1 // pred_check
      _
    $region63: #{_lambda_.1} parent=1 // pred_check_branch
      %75 = sbr.rel (0) target = $region65
    $region64: #{_lambda_.1} parent=1 // pred_region
      %76 = dma.done [#allocation5], 16
    $region65: #{_lambda_.1} parent=1 // pred_fallthru
      _
    // Predicated region
    $region66: #{_lambda_.1} parent=1 // pred_check
      _
    $region67: #{_lambda_.1} parent=1 // pred_check_branch
      %78 = sbr.rel (0) target = $region69
    $region68: #{_lambda_.1} parent=1 // pred_region
      %79 = dma.done [#allocation7], 16
    $region69: #{_lambda_.1} parent=1 // pred_fallthru
      _
    %80 = sfence
    %v82 = vld [vmem:[%s0] sm:$0xf]
    %s83 = sld [smem:[#allocation3]]
    %s84 = sld [smem:[#allocation6]]
    %v85 = vld [vmem:[%s1] sm:$0xf]
    %v86 = vld [vmem:[%s1 + $0x4] sm:$0xf]
    %v87 = vld [vmem:[%s2] sm:$0x1]
    %v89 = vlaneseq
    %v90 = vshrl.u32 %v89, 7
    %v91 = vsub.s32 0, %v90
    %v92 = vrot.slane %v87, %v91
    %v96 = vunpack.c.l.b16 %v85
    %v97 = vunpack.c.l.b16 %v86
    %v98 = vpack.c.b16 %v97, %v96
    %vm100 = vcmask 130048
    %v102 = vsel %vm100, %v82, 0
    %104 = vmatprep.subr.bf16.mxu0 0
    %105 = vmatpush1.bf16.msra.mxu0 0
    %106 = vmatprep.subr.bf16.mxu0 0
    %107 = vmatpush1.bf16.msra.mxu0 0
    %108 = vmatprep.subr.bf16.mxu0 0
    %109 = vmatpush1.bf16.msra.mxu0 0
    %110 = vmatprep.subr.bf16.mxu0 0
    %111 = vmatpush1.bf16.msra.mxu0 0
    %112 = vmatprep.subr.bf16.mxu0 0
    %113 = vmatpush1.bf16.msra.mxu0 0
    %114 = vmatprep.subr.bf16.mxu0 0
    %115 = vmatpush1.bf16.msra.mxu0 0
    %116 = vmatprep.subr.bf16.mxu0 0
    %117 = vmatpush1.bf16.msra.mxu0 0
    %118 = vmatprep.subr.bf16.mxu0 0
    %119 = vmatpush1.bf16.msra.mxu0 %v98
    %120 = vmatprep.subr.bf16.mxu0 0
    %121 = vmatpush2.bf16.msra.mxu0 0
    %122 = vmatprep.subr.bf16.mxu0 0
    %123 = vmatpush2.bf16.msra.mxu0 0
    %124 = vmatprep.subr.bf16.mxu0 0
    %125 = vmatpush2.bf16.msra.mxu0 0
    %126 = vmatprep.subr.bf16.mxu0 0
    %127 = vmatpush2.bf16.msra.mxu0 0
    %128 = vmatprep.subr.bf16.mxu0 0
    %129 = vmatpush2.bf16.msra.mxu0 0
    %130 = vmatprep.subr.bf16.mxu0 0
    %131 = vmatpush2.bf16.msra.mxu0 0
    %132 = vmatprep.subr.bf16.mxu0 0
    %133 = vmatpush2.bf16.msra.mxu0 0
    %134 = vmatprep.subr.bf16.mxu0 0
    %135 = vmatpush2.bf16.msra.mxu0 0
    %136 = vmatprep.mubr.bf16.mxu0 0
    %137 = vmatmul.mubr.bf16.gmra.mxu0 %v102
    %v138 = vpop.f32.mrf.mxu0
    %v139 = vadd.f32 %v92, %v138
    %v140 = vpop.f32.mrf.mxu0
    %v141 = vpop.f32.mrf.mxu0
    %v142 = vpop.f32.mrf.mxu0
    %143 = vdwg.mxu0
    %vm144 = vcmp.ge.f32.partialorder %v139, 0.0
    %v145 = vstv %s83
    %v146 = vmul.f32 %v145, %v139
    %v147 = vsel %vm144, %v139, %v146
    %v148 = vrot.slane %v147, 4
    %v149 = vadd.f32 %v147, %v148
    %v150 = vrot.slane %v149, 2
    %v151 = vadd.f32 %v149, %v150
    %v152 = vrot.slane %v151, 1
    %v153 = vadd.f32 %v151, %v152
    %v154 = vrcp.pop 8.0
    %v155 = vmul.f32 %v153, %v154
    %v156 = vsub.f32 %v147, %v155
    %v157 = vmul.f32 %v156, %v156
    %v158 = vrot.slane %v157, 4
    %v159 = vadd.f32 %v157, %v158
    %v160 = vrot.slane %v159, 2
    %v161 = vadd.f32 %v159, %v160
    %v162 = vrot.slane %v161, 1
    %v163 = vadd.f32 %v161, %v162
    %v164 = vmul.f32 %v163, %v154
    %v165 = vadd.f32 %v164, 1e-05
    %v166 = vrsqrt.pop %v165
    %v167 = vmul.f32 %v156, %v166
    %v168 = vpack.c.bf16 %v167, %v167
    %v169 = vld [vmem:[%s3] sm:$0xf]
    %v170 = vld [vmem:[%s3 + $0x4] sm:$0xf]
    %v171 = vld [vmem:[%s3 + $0x8] sm:$0xf]
    %v172 = vld [vmem:[%s3 + $0xc] sm:$0xf]
    %v173 = vld [vmem:[%s3 + $0x10] sm:$0xf]
    %v174 = vld [vmem:[%s3 + $0x14] sm:$0xf]
    %v175 = vld [vmem:[%s3 + $0x18] sm:$0xf]
    %v176 = vld [vmem:[%s3 + $0x1c] sm:$0xf]
    %v177 = vld [vmem:[%s3 + $0x20] sm:$0xf]
    %v178 = vld [vmem:[%s3 + $0x24] sm:$0xf]
    %v179 = vld [vmem:[%s3 + $0x28] sm:$0xf]
    %v180 = vld [vmem:[%s3 + $0x2c] sm:$0xf]
    %v181 = vld [vmem:[%s3 + $0x30] sm:$0xf]
    %v182 = vld [vmem:[%s3 + $0x34] sm:$0xf]
    %v183 = vld [vmem:[%s3 + $0x38] sm:$0xf]
    %v184 = vld [vmem:[%s3 + $0x3c] sm:$0xf]
    %v185 = vld [vmem:[%s4] sm:$0x1]
    %v187 = vlaneseq
    %v188 = vshrl.u32 %v187, 7
    %v189 = vsub.s32 0, %v188
    %v190 = vrot.slane %v185, %v189
    %v208 = vunpack.c.l.b16 %v169
    %v209 = vunpack.c.l.b16 %v170
    %v210 = vunpack.c.l.b16 %v171
    %v211 = vunpack.c.l.b16 %v172
    %v212 = vunpack.c.l.b16 %v173
    %v213 = vunpack.c.l.b16 %v174
    %v214 = vunpack.c.l.b16 %v175
    %v215 = vunpack.c.l.b16 %v176
    %v216 = vunpack.c.l.b16 %v177
    %v217 = vunpack.c.l.b16 %v178
    %v218 = vunpack.c.l.b16 %v179
    %v219 = vunpack.c.l.b16 %v180
    %v220 = vunpack.c.l.b16 %v181
    %v221 = vunpack.c.l.b16 %v182
    %v222 = vunpack.c.l.b16 %v183
    %v223 = vunpack.c.l.b16 %v184
    %v224 = vpack.c.b16 %v209, %v208
    %v225 = vpack.c.b16 %v211, %v210
    %v226 = vpack.c.b16 %v213, %v212
    %v227 = vpack.c.b16 %v215, %v214
    %v228 = vpack.c.b16 %v217, %v216
    %v229 = vpack.c.b16 %v219, %v218
    %v230 = vpack.c.b16 %v221, %v220
    %v231 = vpack.c.b16 %v223, %v222
    %240 = vmatprep.subr.bf16.mxu0 0
    %241 = vmatpush1.bf16.msra.mxu0 %v231
    %242 = vmatprep.subr.bf16.mxu0 0
    %243 = vmatpush1.bf16.msra.mxu0 %v230
    %244 = vmatprep.subr.bf16.mxu0 0
    %245 = vmatpush1.bf16.msra.mxu0 %v229
    %246 = vmatprep.subr.bf16.mxu0 0
    %247 = vmatpush1.bf16.msra.mxu0 %v228
    %248 = vmatprep.subr.bf16.mxu0 0
    %249 = vmatpush1.bf16.msra.mxu0 %v227
    %250 = vmatprep.subr.bf16.mxu0 0
    %251 = vmatpush1.bf16.msra.mxu0 %v226
    %252 = vmatprep.subr.bf16.mxu0 0
    %253 = vmatpush1.bf16.msra.mxu0 %v225
    %254 = vmatprep.subr.bf16.mxu0 0
    %255 = vmatpush1.bf16.msra.mxu0 %v224
    %256 = vmatprep.subr.bf16.mxu0 0
    %257 = vmatpush2.bf16.msra.mxu0 0
    %258 = vmatprep.subr.bf16.mxu0 0
    %259 = vmatpush2.bf16.msra.mxu0 0
    %260 = vmatprep.subr.bf16.mxu0 0
    %261 = vmatpush2.bf16.msra.mxu0 0
    %262 = vmatprep.subr.bf16.mxu0 0
    %263 = vmatpush2.bf16.msra.mxu0 0
    %264 = vmatprep.subr.bf16.mxu0 0
    %265 = vmatpush2.bf16.msra.mxu0 0
    %266 = vmatprep.subr.bf16.mxu0 0
    %267 = vmatpush2.bf16.msra.mxu0 0
    %268 = vmatprep.subr.bf16.mxu0 0
    %269 = vmatpush2.bf16.msra.mxu0 0
    %270 = vmatprep.subr.bf16.mxu0 0
    %271 = vmatpush2.bf16.msra.mxu0 0
    %272 = vmatprep.mubr.bf16.mxu0 0
    %273 = vmatmul.mubr.bf16.gmra.mxu0 %v168
    %v274 = vpop.f32.mrf.mxu0
    %v275 = vadd.f32 %v190, %v274
    %v276 = vpop.f32.mrf.mxu0
    %v277 = vpop.f32.mrf.mxu0
    %v278 = vpop.f32.mrf.mxu0
    %279 = vdwg.mxu0
    %vm280 = vcmask 523264
    %v281 = vsel %vm280, %v275, 0.0
    %v282 = vrot.slane %v281, 4
    %v283 = vadd.f32 %v281, %v282
    %v284 = vrot.slane %v283, 2
    %v285 = vadd.f32 %v283, %v284
    %v286 = vrot.slane %v285, 1
    %v287 = vadd.f32 %v285, %v286
    %v288 = vmul.f32 %v287, %v154
    %v289 = vsub.f32 %v275, %v288
    %v290 = vmul.f32 %v289, %v289
    %v291 = vsel %vm280, %v290, 0.0
    %v292 = vrot.slane %v291, 4
    %v293 = vadd.f32 %v291, %v292
    %v294 = vrot.slane %v293, 2
    %v295 = vadd.f32 %v293, %v294
    %v296 = vrot.slane %v295, 1
    %v297 = vadd.f32 %v295, %v296
    %v298 = vmul.f32 %v297, %v154
    %v299 = vadd.f32 %v298, 1e-05
    %v300 = vrsqrt.pop %v299
    %v301 = vmul.f32 %v289, %v300
    %v302 = vpack.c.bf16 %v301, %v301
    %v303 = vld [vmem:[%s5] sm:$0xff]
    %v304 = vld [vmem:[%s5 + $0x8] sm:$0xff]
    %v305 = vld [vmem:[%s5 + $0x10] sm:$0xff]
    %v306 = vld [vmem:[%s5 + $0x18] sm:$0xff]
    %v307 = vld [vmem:[%s5 + $0x20] sm:$0xff]
    %v308 = vld [vmem:[%s5 + $0x28] sm:$0xff]
    %v309 = vld [vmem:[%s5 + $0x30] sm:$0xff]
    %v310 = vld [vmem:[%s5 + $0x38] sm:$0xff]
    %v311 = vld [vmem:[%s6] sm:$0x3]
    %v313 = vlaneseq
    %v314 = vshrl.u32 %v313, 7
    %v315 = vsub.s32 0, %v314
    %v316 = vrot.slane %v311, %v315
    %v317 = vlaneseq
    %v318 = vshrl.u32 %v317, 7
    %v319 = vsub.s32 1, %v318
    %v320 = vrot.slane %v311, %v319
    %v331 = vunpack.c.l.b16 %v303
    %v332 = vunpack.c.h.b16 %v303
    %v333 = vunpack.c.l.b16 %v304
    %v334 = vunpack.c.h.b16 %v304
    %v335 = vunpack.c.l.b16 %v305
    %v336 = vunpack.c.h.b16 %v305
    %v337 = vunpack.c.l.b16 %v306
    %v338 = vunpack.c.h.b16 %v306
    %v339 = vunpack.c.l.b16 %v307
    %v340 = vunpack.c.h.b16 %v307
    %v341 = vunpack.c.l.b16 %v308
    %v342 = vunpack.c.h.b16 %v308
    %v343 = vunpack.c.l.b16 %v309
    %v344 = vunpack.c.h.b16 %v309
    %v345 = vunpack.c.l.b16 %v310
    %v346 = vunpack.c.h.b16 %v310
    %v347 = vpack.c.b16 %v333, %v331
    %v348 = vpack.c.b16 %v334, %v332
    %v349 = vpack.c.b16 %v337, %v335
    %v350 = vpack.c.b16 %v338, %v336
    %v351 = vpack.c.b16 %v341, %v339
    %v352 = vpack.c.b16 %v342, %v340
    %v353 = vpack.c.b16 %v345, %v343
    %v354 = vpack.c.b16 %v346, %v344
    %v364 = vsel %vm280, %v302, 0
    %366 = vmatprep.subr.bf16.mxu0 0
    %367 = vmatpush1.bf16.msra.mxu0 0
    %368 = vmatprep.subr.bf16.mxu0 0
    %369 = vmatpush1.bf16.msra.mxu0 0
    %370 = vmatprep.subr.bf16.mxu0 0
    %371 = vmatpush1.bf16.msra.mxu0 0
    %372 = vmatprep.subr.bf16.mxu0 0
    %373 = vmatpush1.bf16.msra.mxu0 0
    %374 = vmatprep.subr.bf16.mxu0 %v354
    %375 = vmatpush1.bf16.msra.mxu0 %v353
    %376 = vmatprep.subr.bf16.mxu0 %v352
    %377 = vmatpush1.bf16.msra.mxu0 %v351
    %378 = vmatprep.subr.bf16.mxu0 %v350
    %379 = vmatpush1.bf16.msra.mxu0 %v349
    %380 = vmatprep.subr.bf16.mxu0 %v348
    %381 = vmatpush1.bf16.msra.mxu0 %v347
    %382 = vmatprep.subr.bf16.mxu0 0
    %383 = vmatpush2.bf16.msra.mxu0 0
    %384 = vmatprep.subr.bf16.mxu0 0
    %385 = vmatpush2.bf16.msra.mxu0 0
    %386 = vmatprep.subr.bf16.mxu0 0
    %387 = vmatpush2.bf16.msra.mxu0 0
    %388 = vmatprep.subr.bf16.mxu0 0
    %389 = vmatpush2.bf16.msra.mxu0 0
    %390 = vmatprep.subr.bf16.mxu0 0
    %391 = vmatpush2.bf16.msra.mxu0 0
    %392 = vmatprep.subr.bf16.mxu0 0
    %393 = vmatpush2.bf16.msra.mxu0 0
    %394 = vmatprep.subr.bf16.mxu0 0
    %395 = vmatpush2.bf16.msra.mxu0 0
    %396 = vmatprep.subr.bf16.mxu0 0
    %397 = vmatpush2.bf16.msra.mxu0 0
    %398 = vmatprep.mubr.bf16.mxu0 0
    %399 = vmatmul.mubr.bf16.gmra.mxu0 %v364
    %v400 = vpop.f32.mrf.mxu0
    %v401 = vadd.f32 %v316, %v400
    %v402 = vpop.f32.mrf.mxu0
    %v403 = vadd.f32 %v320, %v402
    %v404 = vpop.f32.mrf.mxu0
    %v405 = vpop.f32.mrf.mxu0
    %406 = vdwg.mxu0
    %vm407 = vcmask 7168
    %408 = vst.msk [vmem:[%s16] sm:$0xff] %vm407, %v403
    %vm409 = vcmp.ge.f32.partialorder %v401, 0.0
    %v410 = vstv %s84
    %v411 = vmul.f32 %v410, %v401
    %v412 = vsel %vm409, %v401, %v411
    %v413 = vrot.slane %v412, 4
    %v414 = vadd.f32 %v412, %v413
    %v415 = vrot.slane %v414, 2
    %v416 = vadd.f32 %v414, %v415
    %v417 = vrot.slane %v416, 1
    %v418 = vadd.f32 %v416, %v417
    %v419 = vmul.f32 %v418, %v154
    %v420 = vsub.f32 %v412, %v419
    %v421 = vmul.f32 %v420, %v420
    %v422 = vrot.slane %v421, 4
    %v423 = vadd.f32 %v421, %v422
    %v424 = vrot.slane %v423, 2
    %v425 = vadd.f32 %v423, %v424
    %v426 = vrot.slane %v425, 1
    %v427 = vadd.f32 %v425, %v426
    %v428 = vmul.f32 %v427, %v154
    %v429 = vadd.f32 %v428, 1e-05
    %v430 = vrsqrt.pop %v429
    %v431 = vmul.f32 %v420, %v430
    %v432 = vpack.c.bf16 %v431, %v431
    %v433 = vld [vmem:[%s7] sm:$0xf]
    %v434 = vld [vmem:[%s7 + $0x4] sm:$0xf]
    %v435 = vld [vmem:[%s7 + $0x8] sm:$0xf]
    %v436 = vld [vmem:[%s7 + $0xc] sm:$0xf]
    %v437 = vld [vmem:[%s7 + $0x10] sm:$0xf]
    %v438 = vld [vmem:[%s7 + $0x14] sm:$0xf]
    %v439 = vld [vmem:[%s7 + $0x18] sm:$0xf]
    %v440 = vld [vmem:[%s7 + $0x1c] sm:$0xf]
    %v441 = vld [vmem:[%s7 + $0x20] sm:$0xf]
    %v442 = vld [vmem:[%s7 + $0x24] sm:$0xf]
    %v443 = vld [vmem:[%s7 + $0x28] sm:$0xf]
    %v444 = vld [vmem:[%s7 + $0x2c] sm:$0xf]
    %v445 = vld [vmem:[%s7 + $0x30] sm:$0xf]
    %v446 = vld [vmem:[%s7 + $0x34] sm:$0xf]
    %v447 = vld [vmem:[%s7 + $0x38] sm:$0xf]
    %v448 = vld [vmem:[%s7 + $0x3c] sm:$0xf]
    %v449 = vld [vmem:[%s8] sm:$0x1]
    %v451 = vlaneseq
    %v452 = vshrl.u32 %v451, 7
    %v453 = vsub.s32 0, %v452
    %v454 = vrot.slane %v449, %v453
    %v472 = vunpack.c.l.b16 %v433
    %v473 = vunpack.c.l.b16 %v434
    %v474 = vunpack.c.l.b16 %v435
    %v475 = vunpack.c.l.b16 %v436
    %v476 = vunpack.c.l.b16 %v437
    %v477 = vunpack.c.l.b16 %v438
    %v478 = vunpack.c.l.b16 %v439
    %v479 = vunpack.c.l.b16 %v440
    %v480 = vunpack.c.l.b16 %v441
    %v481 = vunpack.c.l.b16 %v442
    %v482 = vunpack.c.l.b16 %v443
    %v483 = vunpack.c.l.b16 %v444
    %v484 = vunpack.c.l.b16 %v445
    %v485 = vunpack.c.l.b16 %v446
    %v486 = vunpack.c.l.b16 %v447
    %v487 = vunpack.c.l.b16 %v448
    %v488 = vpack.c.b16 %v473, %v472
    %v489 = vpack.c.b16 %v475, %v474
    %v490 = vpack.c.b16 %v477, %v476
    %v491 = vpack.c.b16 %v479, %v478
    %v492 = vpack.c.b16 %v481, %v480
    %v493 = vpack.c.b16 %v483, %v482
    %v494 = vpack.c.b16 %v485, %v484
    %v495 = vpack.c.b16 %v487, %v486
    %504 = vmatprep.subr.bf16.mxu0 0
    %505 = vmatpush1.bf16.msra.mxu0 %v495
    %506 = vmatprep.subr.bf16.mxu0 0
    %507 = vmatpush1.bf16.msra.mxu0 %v494
    %508 = vmatprep.subr.bf16.mxu0 0
    %509 = vmatpush1.bf16.msra.mxu0 %v493
    %510 = vmatprep.subr.bf16.mxu0 0
    %511 = vmatpush1.bf16.msra.mxu0 %v492
    %512 = vmatprep.subr.bf16.mxu0 0
    %513 = vmatpush1.bf16.msra.mxu0 %v491
    %514 = vmatprep.subr.bf16.mxu0 0
    %515 = vmatpush1.bf16.msra.mxu0 %v490
    %516 = vmatprep.subr.bf16.mxu0 0
    %517 = vmatpush1.bf16.msra.mxu0 %v489
    %518 = vmatprep.subr.bf16.mxu0 0
    %519 = vmatpush1.bf16.msra.mxu0 %v488
    %520 = vmatprep.subr.bf16.mxu0 0
    %521 = vmatpush2.bf16.msra.mxu0 0
    %522 = vmatprep.subr.bf16.mxu0 0
    %523 = vmatpush2.bf16.msra.mxu0 0
    %524 = vmatprep.subr.bf16.mxu0 0
    %525 = vmatpush2.bf16.msra.mxu0 0
    %526 = vmatprep.subr.bf16.mxu0 0
    %527 = vmatpush2.bf16.msra.mxu0 0
    %528 = vmatprep.subr.bf16.mxu0 0
    %529 = vmatpush2.bf16.msra.mxu0 0
    %530 = vmatprep.subr.bf16.mxu0 0
    %531 = vmatpush2.bf16.msra.mxu0 0
    %532 = vmatprep.subr.bf16.mxu0 0
    %533 = vmatpush2.bf16.msra.mxu0 0
    %534 = vmatprep.subr.bf16.mxu0 0
    %535 = vmatpush2.bf16.msra.mxu0 0
    %536 = vmatprep.mubr.bf16.mxu0 0
    %537 = vmatmul.mubr.bf16.gmra.mxu0 %v432
    %v538 = vpop.f32.mrf.mxu0
    %v539 = vadd.f32 %v454, %v538
    %v540 = vpop.f32.mrf.mxu0
    %v541 = vpop.f32.mrf.mxu0
    %v542 = vpop.f32.mrf.mxu0
    %543 = vdwg.mxu0
    %544 = vst.msk [vmem:[%s15] sm:$0xff] %vm100, %v539
    %s545 = scalar_lea.vmem %s0, 4
    %v546 = vld [vmem:[%s545] sm:$0xf]
    %s547 = sld [smem:[#allocation3 + $0x1]]
    %s548 = sld [smem:[#allocation6 + $0x1]]
    %s549 = scalar_lea.vmem %s1, 8
    %v550 = vld [vmem:[%s549] sm:$0xf]
    %v551 = vld [vmem:[%s549 + $0x4] sm:$0xf]
    %s552 = scalar_lea.vmem %s2, 1
    %v553 = vld [vmem:[%s552] sm:$0x1]
    %v555 = vlaneseq
    %v556 = vshrl.u32 %v555, 7
    %v557 = vsub.s32 0, %v556
    %v558 = vrot.slane %v553, %v557
    %v562 = vunpack.c.l.b16 %v550
    %v563 = vunpack.c.l.b16 %v551
    %v564 = vpack.c.b16 %v563, %v562
    %v567 = vsel %vm100, %v546, 0
    %569 = vmatprep.subr.bf16.mxu0 0
    %570 = vmatpush1.bf16.msra.mxu0 0
    %571 = vmatprep.subr.bf16.mxu0 0
    %572 = vmatpush1.bf16.msra.mxu0 0
    %573 = vmatprep.subr.bf16.mxu0 0
    %574 = vmatpush1.bf16.msra.mxu0 0
    %575 = vmatprep.subr.bf16.mxu0 0
    %576 = vmatpush1.bf16.msra.mxu0 0
    %577 = vmatprep.subr.bf16.mxu0 0
    %578 = vmatpush1.bf16.msra.mxu0 0
    %579 = vmatprep.subr.bf16.mxu0 0
    %580 = vmatpush1.bf16.msra.mxu0 0
    %581 = vmatprep.subr.bf16.mxu0 0
    %582 = vmatpush1.bf16.msra.mxu0 0
    %583 = vmatprep.subr.bf16.mxu0 0
    %584 = vmatpush1.bf16.msra.mxu0 %v564
    %585 = vmatprep.subr.bf16.mxu0 0
    %586 = vmatpush2.bf16.msra.mxu0 0
    %587 = vmatprep.subr.bf16.mxu0 0
    %588 = vmatpush2.bf16.msra.mxu0 0
    %589 = vmatprep.subr.bf16.mxu0 0
    %590 = vmatpush2.bf16.msra.mxu0 0
    %591 = vmatprep.subr.bf16.mxu0 0
    %592 = vmatpush2.bf16.msra.mxu0 0
    %593 = vmatprep.subr.bf16.mxu0 0
    %594 = vmatpush2.bf16.msra.mxu0 0
    %595 = vmatprep.subr.bf16.mxu0 0
    %596 = vmatpush2.bf16.msra.mxu0 0
    %597 = vmatprep.subr.bf16.mxu0 0
    %598 = vmatpush2.bf16.msra.mxu0 0
    %599 = vmatprep.subr.bf16.mxu0 0
    %600 = vmatpush2.bf16.msra.mxu0 0
    %601 = vmatprep.mubr.bf16.mxu0 0
    %602 = vmatmul.mubr.bf16.gmra.mxu0 %v567
    %v603 = vpop.f32.mrf.mxu0
    %v604 = vadd.f32 %v558, %v603
    %v605 = vpop.f32.mrf.mxu0
    %v606 = vpop.f32.mrf.mxu0
    %v607 = vpop.f32.mrf.mxu0
    %608 = vdwg.mxu0
    %vm609 = vcmp.ge.f32.partialorder %v604, 0.0
    %v610 = vstv %s547
    %v611 = vmul.f32 %v610, %v604
    %v612 = vsel %vm609, %v604, %v611
    %v613 = vrot.slane %v612, 4
    %v614 = vadd.f32 %v612, %v613
    %v615 = vrot.slane %v614, 2
    %v616 = vadd.f32 %v614, %v615
    %v617 = vrot.slane %v616, 1
    %v618 = vadd.f32 %v616, %v617
    %v619 = vmul.f32 %v618, %v154
    %v620 = vsub.f32 %v612, %v619
    %v621 = vmul.f32 %v620, %v620
    %v622 = vrot.slane %v621, 4
    %v623 = vadd.f32 %v621, %v622
    %v624 = vrot.slane %v623, 2
    %v625 = vadd.f32 %v623, %v624
    %v626 = vrot.slane %v625, 1
    %v627 = vadd.f32 %v625, %v626
    %v628 = vmul.f32 %v627, %v154
    %v629 = vadd.f32 %v628, 1e-05
    %v630 = vrsqrt.pop %v629
    %v631 = vmul.f32 %v620, %v630
    %v632 = vpack.c.bf16 %v631, %v631
    %s633 = scalar_lea.vmem %s3, 64
    %v634 = vld [vmem:[%s633] sm:$0xf]
    %v635 = vld [vmem:[%s633 + $0x4] sm:$0xf]
    %v636 = vld [vmem:[%s633 + $0x8] sm:$0xf]
    %v637 = vld [vmem:[%s633 + $0xc] sm:$0xf]
    %v638 = vld [vmem:[%s633 + $0x10] sm:$0xf]
    %v639 = vld [vmem:[%s633 + $0x14] sm:$0xf]
    %v640 = vld [vmem:[%s633 + $0x18] sm:$0xf]
    %v641 = vld [vmem:[%s633 + $0x1c] sm:$0xf]
    %v642 = vld [vmem:[%s633 + $0x20] sm:$0xf]
    %v643 = vld [vmem:[%s633 + $0x24] sm:$0xf]
    %v644 = vld [vmem:[%s633 + $0x28] sm:$0xf]
    %v645 = vld [vmem:[%s633 + $0x2c] sm:$0xf]
    %v646 = vld [vmem:[%s633 + $0x30] sm:$0xf]
    %v647 = vld [vmem:[%s633 + $0x34] sm:$0xf]
    %v648 = vld [vmem:[%s633 + $0x38] sm:$0xf]
    %v649 = vld [vmem:[%s633 + $0x3c] sm:$0xf]
    %s650 = scalar_lea.vmem %s4, 1
    %v651 = vld [vmem:[%s650] sm:$0x1]
    %v653 = vlaneseq
    %v654 = vshrl.u32 %v653, 7
    %v655 = vsub.s32 0, %v654
    %v656 = vrot.slane %v651, %v655
    %v674 = vunpack.c.l.b16 %v634
    %v675 = vunpack.c.l.b16 %v635
    %v676 = vunpack.c.l.b16 %v636
    %v677 = vunpack.c.l.b16 %v637
    %v678 = vunpack.c.l.b16 %v638
    %v679 = vunpack.c.l.b16 %v639
    %v680 = vunpack.c.l.b16 %v640
    %v681 = vunpack.c.l.b16 %v641
    %v682 = vunpack.c.l.b16 %v642
    %v683 = vunpack.c.l.b16 %v643
    %v684 = vunpack.c.l.b16 %v644
    %v685 = vunpack.c.l.b16 %v645
    %v686 = vunpack.c.l.b16 %v646
    %v687 = vunpack.c.l.b16 %v647
    %v688 = vunpack.c.l.b16 %v648
    %v689 = vunpack.c.l.b16 %v649
    %v690 = vpack.c.b16 %v675, %v674
    %v691 = vpack.c.b16 %v677, %v676
    %v692 = vpack.c.b16 %v679, %v678
    %v693 = vpack.c.b16 %v681, %v680
    %v694 = vpack.c.b16 %v683, %v682
    %v695 = vpack.c.b16 %v685, %v684
    %v696 = vpack.c.b16 %v687, %v686
    %v697 = vpack.c.b16 %v689, %v688
    %706 = vmatprep.subr.bf16.mxu0 0
    %707 = vmatpush1.bf16.msra.mxu0 %v697
    %708 = vmatprep.subr.bf16.mxu0 0
    %709 = vmatpush1.bf16.msra.mxu0 %v696
    %710 = vmatprep.subr.bf16.mxu0 0
    %711 = vmatpush1.bf16.msra.mxu0 %v695
    %712 = vmatprep.subr.bf16.mxu0 0
    %713 = vmatpush1.bf16.msra.mxu0 %v694
    %714 = vmatprep.subr.bf16.mxu0 0
    %715 = vmatpush1.bf16.msra.mxu0 %v693
    %716 = vmatprep.subr.bf16.mxu0 0
    %717 = vmatpush1.bf16.msra.mxu0 %v692
    %718 = vmatprep.subr.bf16.mxu0 0
    %719 = vmatpush1.bf16.msra.mxu0 %v691
    %720 = vmatprep.subr.bf16.mxu0 0
    %721 = vmatpush1.bf16.msra.mxu0 %v690
    %722 = vmatprep.subr.bf16.mxu0 0
    %723 = vmatpush2.bf16.msra.mxu0 0
    %724 = vmatprep.subr.bf16.mxu0 0
    %725 = vmatpush2.bf16.msra.mxu0 0
    %726 = vmatprep.subr.bf16.mxu0 0
    %727 = vmatpush2.bf16.msra.mxu0 0
    %728 = vmatprep.subr.bf16.mxu0 0
    %729 = vmatpush2.bf16.msra.mxu0 0
    %730 = vmatprep.subr.bf16.mxu0 0
    %731 = vmatpush2.bf16.msra.mxu0 0
    %732 = vmatprep.subr.bf16.mxu0 0
    %733 = vmatpush2.bf16.msra.mxu0 0
    %734 = vmatprep.subr.bf16.mxu0 0
    %735 = vmatpush2.bf16.msra.mxu0 0
    %736 = vmatprep.subr.bf16.mxu0 0
    %737 = vmatpush2.bf16.msra.mxu0 0
    %738 = vmatprep.mubr.bf16.mxu0 0
    %739 = vmatmul.mubr.bf16.gmra.mxu0 %v632
    %v740 = vpop.f32.mrf.mxu0
    %v741 = vadd.f32 %v656, %v740
    %v742 = vpop.f32.mrf.mxu0
    %v743 = vpop.f32.mrf.mxu0
    %v744 = vpop.f32.mrf.mxu0
    %745 = vdwg.mxu0
    %v746 = vadd.f32 %v275, %v741
    %v747 = vsel %vm280, %v741, 0.0
    %v748 = vrot.slane %v747, 4
    %v749 = vadd.f32 %v747, %v748
    %v750 = vrot.slane %v749, 2
    %v751 = vadd.f32 %v749, %v750
    %v752 = vrot.slane %v751, 1
    %v753 = vadd.f32 %v751, %v752
    %v754 = vmul.f32 %v753, %v154
    %v755 = vsub.f32 %v741, %v754
    %v756 = vmul.f32 %v755, %v755
    %v757 = vsel %vm280, %v756, 0.0
    %v758 = vrot.slane %v757, 4
    %v759 = vadd.f32 %v757, %v758
    %v760 = vrot.slane %v759, 2
    %v761 = vadd.f32 %v759, %v760
    %v762 = vrot.slane %v761, 1
    %v763 = vadd.f32 %v761, %v762
    %v764 = vmul.f32 %v763, %v154
    %v765 = vadd.f32 %v764, 1e-05
    %v766 = vrsqrt.pop %v765
    %v767 = vmul.f32 %v755, %v766
    %v768 = vpack.c.bf16 %v767, %v767
    %s769 = scalar_lea.vmem %s5, 64
    %v770 = vld [vmem:[%s769] sm:$0xff]
    %v771 = vld [vmem:[%s769 + $0x8] sm:$0xff]
    %v772 = vld [vmem:[%s769 + $0x10] sm:$0xff]
    %v773 = vld [vmem:[%s769 + $0x18] sm:$0xff]
    %v774 = vld [vmem:[%s769 + $0x20] sm:$0xff]
    %v775 = vld [vmem:[%s769 + $0x28] sm:$0xff]
    %v776 = vld [vmem:[%s769 + $0x30] sm:$0xff]
    %v777 = vld [vmem:[%s769 + $0x38] sm:$0xff]
    %s778 = scalar_lea.vmem %s6, 2
    %v779 = vld [vmem:[%s778] sm:$0x3]
    %v781 = vlaneseq
    %v782 = vshrl.u32 %v781, 7
    %v783 = vsub.s32 0, %v782
    %v784 = vrot.slane %v779, %v783
    %v785 = vlaneseq
    %v786 = vshrl.u32 %v785, 7
    %v787 = vsub.s32 1, %v786
    %v788 = vrot.slane %v779, %v787
    %v799 = vunpack.c.l.b16 %v770
    %v800 = vunpack.c.h.b16 %v770
    %v801 = vunpack.c.l.b16 %v771
    %v802 = vunpack.c.h.b16 %v771
    %v803 = vunpack.c.l.b16 %v772
    %v804 = vunpack.c.h.b16 %v772
    %v805 = vunpack.c.l.b16 %v773
    %v806 = vunpack.c.h.b16 %v773
    %v807 = vunpack.c.l.b16 %v774
    %v808 = vunpack.c.h.b16 %v774
    %v809 = vunpack.c.l.b16 %v775
    %v810 = vunpack.c.h.b16 %v775
    %v811 = vunpack.c.l.b16 %v776
    %v812 = vunpack.c.h.b16 %v776
    %v813 = vunpack.c.l.b16 %v777
    %v814 = vunpack.c.h.b16 %v777
    %v815 = vpack.c.b16 %v801, %v799
    %v816 = vpack.c.b16 %v802, %v800
    %v817 = vpack.c.b16 %v805, %v803
    %v818 = vpack.c.b16 %v806, %v804
    %v819 = vpack.c.b16 %v809, %v807
    %v820 = vpack.c.b16 %v810, %v808
    %v821 = vpack.c.b16 %v813, %v811
    %v822 = vpack.c.b16 %v814, %v812
    %v832 = vsel %vm280, %v768, 0
    %834 = vmatprep.subr.bf16.mxu0 0
    %835 = vmatpush1.bf16.msra.mxu0 0
    %836 = vmatprep.subr.bf16.mxu0 0
    %837 = vmatpush1.bf16.msra.mxu0 0
    %838 = vmatprep.subr.bf16.mxu0 0
    %839 = vmatpush1.bf16.msra.mxu0 0
    %840 = vmatprep.subr.bf16.mxu0 0
    %841 = vmatpush1.bf16.msra.mxu0 0
    %842 = vmatprep.subr.bf16.mxu0 %v822
    %843 = vmatpush1.bf16.msra.mxu0 %v821
    %844 = vmatprep.subr.bf16.mxu0 %v820
    %845 = vmatpush1.bf16.msra.mxu0 %v819
    %846 = vmatprep.subr.bf16.mxu0 %v818
    %847 = vmatpush1.bf16.msra.mxu0 %v817
    %848 = vmatprep.subr.bf16.mxu0 %v816
    %849 = vmatpush1.bf16.msra.mxu0 %v815
    %850 = vmatprep.subr.bf16.mxu0 0
    %851 = vmatpush2.bf16.msra.mxu0 0
    %852 = vmatprep.subr.bf16.mxu0 0
    %853 = vmatpush2.bf16.msra.mxu0 0
    %854 = vmatprep.subr.bf16.mxu0 0
    %855 = vmatpush2.bf16.msra.mxu0 0
    %856 = vmatprep.subr.bf16.mxu0 0
    %857 = vmatpush2.bf16.msra.mxu0 0
    %858 = vmatprep.subr.bf16.mxu0 0
    %859 = vmatpush2.bf16.msra.mxu0 0
    %860 = vmatprep.subr.bf16.mxu0 0
    %861 = vmatpush2.bf16.msra.mxu0 0
    %862 = vmatprep.subr.bf16.mxu0 0
    %863 = vmatpush2.bf16.msra.mxu0 0
    %864 = vmatprep.subr.bf16.mxu0 0
    %865 = vmatpush2.bf16.msra.mxu0 0
    %866 = vmatprep.mubr.bf16.mxu0 0
    %867 = vmatmul.mubr.bf16.gmra.mxu0 %v832
    %v868 = vpop.f32.mrf.mxu0
    %v869 = vadd.f32 %v784, %v868
    %v870 = vpop.f32.mrf.mxu0
    %v871 = vadd.f32 %v788, %v870
    %v872 = vpop.f32.mrf.mxu0
    %v873 = vpop.f32.mrf.mxu0
    %874 = vdwg.mxu0
    %876 = vrot.lane.b32.xlu0 %v871, 1
    %v877 = vpop.permute.xlu0 %876
    %vm879 = vcmask 15368
    %880 = vst.msk [vmem:[%s16] sm:$0xff] %vm879, %v877
    %vm881 = vcmp.ge.f32.partialorder %v869, 0.0
    %v882 = vstv %s548
    %v883 = vmul.f32 %v882, %v869
    %v884 = vsel %vm881, %v869, %v883
    %v885 = vrot.slane %v884, 4
    %v886 = vadd.f32 %v884, %v885
    %v887 = vrot.slane %v886, 2
    %v888 = vadd.f32 %v886, %v887
    %v889 = vrot.slane %v888, 1
    %v890 = vadd.f32 %v888, %v889
    %v891 = vmul.f32 %v890, %v154
    %v892 = vsub.f32 %v884, %v891
    %v893 = vmul.f32 %v892, %v892
    %v894 = vrot.slane %v893, 4
    %v895 = vadd.f32 %v893, %v894
    %v896 = vrot.slane %v895, 2
    %v897 = vadd.f32 %v895, %v896
    %v898 = vrot.slane %v897, 1
    %v899 = vadd.f32 %v897, %v898
    %v900 = vmul.f32 %v899, %v154
    %v901 = vadd.f32 %v900, 1e-05
    %v902 = vrsqrt.pop %v901
    %v903 = vmul.f32 %v892, %v902
    %v904 = vpack.c.bf16 %v903, %v903
    %s905 = scalar_lea.vmem %s7, 64
    %v906 = vld [vmem:[%s905] sm:$0xf]
    %v907 = vld [vmem:[%s905 + $0x4] sm:$0xf]
    %v908 = vld [vmem:[%s905 + $0x8] sm:$0xf]
    %v909 = vld [vmem:[%s905 + $0xc] sm:$0xf]
    %v910 = vld [vmem:[%s905 + $0x10] sm:$0xf]
    %v911 = vld [vmem:[%s905 + $0x14] sm:$0xf]
    %v912 = vld [vmem:[%s905 + $0x18] sm:$0xf]
    %v913 = vld [vmem:[%s905 + $0x1c] sm:$0xf]
    %v914 = vld [vmem:[%s905 + $0x20] sm:$0xf]
    %v915 = vld [vmem:[%s905 + $0x24] sm:$0xf]
    %v916 = vld [vmem:[%s905 + $0x28] sm:$0xf]
    %v917 = vld [vmem:[%s905 + $0x2c] sm:$0xf]
    %v918 = vld [vmem:[%s905 + $0x30] sm:$0xf]
    %v919 = vld [vmem:[%s905 + $0x34] sm:$0xf]
    %v920 = vld [vmem:[%s905 + $0x38] sm:$0xf]
    %v921 = vld [vmem:[%s905 + $0x3c] sm:$0xf]
    %s922 = scalar_lea.vmem %s8, 1
    %v923 = vld [vmem:[%s922] sm:$0x1]
    %v925 = vlaneseq
    %v926 = vshrl.u32 %v925, 7
    %v927 = vsub.s32 0, %v926
    %v928 = vrot.slane %v923, %v927
    %v946 = vunpack.c.l.b16 %v906
    %v947 = vunpack.c.l.b16 %v907
    %v948 = vunpack.c.l.b16 %v908
    %v949 = vunpack.c.l.b16 %v909
    %v950 = vunpack.c.l.b16 %v910
    %v951 = vunpack.c.l.b16 %v911
    %v952 = vunpack.c.l.b16 %v912
    %v953 = vunpack.c.l.b16 %v913
    %v954 = vunpack.c.l.b16 %v914
    %v955 = vunpack.c.l.b16 %v915
    %v956 = vunpack.c.l.b16 %v916
    %v957 = vunpack.c.l.b16 %v917
    %v958 = vunpack.c.l.b16 %v918
    %v959 = vunpack.c.l.b16 %v919
    %v960 = vunpack.c.l.b16 %v920
    %v961 = vunpack.c.l.b16 %v921
    %v962 = vpack.c.b16 %v947, %v946
    %v963 = vpack.c.b16 %v949, %v948
    %v964 = vpack.c.b16 %v951, %v950
    %v965 = vpack.c.b16 %v953, %v952
    %v966 = vpack.c.b16 %v955, %v954
    %v967 = vpack.c.b16 %v957, %v956
    %v968 = vpack.c.b16 %v959, %v958
    %v969 = vpack.c.b16 %v961, %v960
    %978 = vmatprep.subr.bf16.mxu0 0
    %979 = vmatpush1.bf16.msra.mxu0 %v969
    %980 = vmatprep.subr.bf16.mxu0 0
    %981 = vmatpush1.bf16.msra.mxu0 %v968
    %982 = vmatprep.subr.bf16.mxu0 0
    %983 = vmatpush1.bf16.msra.mxu0 %v967
    %984 = vmatprep.subr.bf16.mxu0 0
    %985 = vmatpush1.bf16.msra.mxu0 %v966
    %986 = vmatprep.subr.bf16.mxu0 0
    %987 = vmatpush1.bf16.msra.mxu0 %v965
    %988 = vmatprep.subr.bf16.mxu0 0
    %989 = vmatpush1.bf16.msra.mxu0 %v964
    %990 = vmatprep.subr.bf16.mxu0 0
    %991 = vmatpush1.bf16.msra.mxu0 %v963
    %992 = vmatprep.subr.bf16.mxu0 0
    %993 = vmatpush1.bf16.msra.mxu0 %v962
    %994 = vmatprep.subr.bf16.mxu0 0
    %995 = vmatpush2.bf16.msra.mxu0 0
    %996 = vmatprep.subr.bf16.mxu0 0
    %997 = vmatpush2.bf16.msra.mxu0 0
    %998 = vmatprep.subr.bf16.mxu0 0
    %999 = vmatpush2.bf16.msra.mxu0 0
    %1000 = vmatprep.subr.bf16.mxu0 0
    %1001 = vmatpush2.bf16.msra.mxu0 0
    %1002 = vmatprep.subr.bf16.mxu0 0
    %1003 = vmatpush2.bf16.msra.mxu0 0
    %1004 = vmatprep.subr.bf16.mxu0 0
    %1005 = vmatpush2.bf16.msra.mxu0 0
    %1006 = vmatprep.subr.bf16.mxu0 0
    %1007 = vmatpush2.bf16.msra.mxu0 0
    %1008 = vmatprep.subr.bf16.mxu0 0
    %1009 = vmatpush2.bf16.msra.mxu0 0
    %1010 = vmatprep.mubr.bf16.mxu0 0
    %1011 = vmatmul.mubr.bf16.gmra.mxu0 %v904
    %v1012 = vpop.f32.mrf.mxu0
    %v1013 = vadd.f32 %v928, %v1012
    %v1014 = vpop.f32.mrf.mxu0
    %v1015 = vpop.f32.mrf.mxu0
    %v1016 = vpop.f32.mrf.mxu0
    %1017 = vdwg.mxu0
    %s1018 = scalar_lea.vmem %s15, 8
    %1019 = vst.msk [vmem:[%s1018] sm:$0xff] %vm100, %v1013
    %s1020 = scalar_lea.vmem %s0, 8
    %v1021 = vld [vmem:[%s1020] sm:$0xf]
    %s1022 = sld [smem:[#allocation3 + $0x2]]
    %s1023 = sld [smem:[#allocation6 + $0x2]]
    %s1024 = scalar_lea.vmem %s1, 16
    %v1025 = vld [vmem:[%s1024] sm:$0xf]
    %v1026 = vld [vmem:[%s1024 + $0x4] sm:$0xf]
    %s1027 = scalar_lea.vmem %s2, 2
    %v1028 = vld [vmem:[%s1027] sm:$0x1]
    %v1030 = vlaneseq
    %v1031 = vshrl.u32 %v1030, 7
    %v1032 = vsub.s32 0, %v1031
    %v1033 = vrot.slane %v1028, %v1032
    %v1037 = vunpack.c.l.b16 %v1025
    %v1038 = vunpack.c.l.b16 %v1026
    %v1039 = vpack.c.b16 %v1038, %v1037
    %v1042 = vsel %vm100, %v1021, 0
    %1044 = vmatprep.subr.bf16.mxu0 0
    %1045 = vmatpush1.bf16.msra.mxu0 0
    %1046 = vmatprep.subr.bf16.mxu0 0
    %1047 = vmatpush1.bf16.msra.mxu0 0
    %1048 = vmatprep.subr.bf16.mxu0 0
    %1049 = vmatpush1.bf16.msra.mxu0 0
    %1050 = vmatprep.subr.bf16.mxu0 0
    %1051 = vmatpush1.bf16.msra.mxu0 0
    %1052 = vmatprep.subr.bf16.mxu0 0
    %1053 = vmatpush1.bf16.msra.mxu0 0
    %1054 = vmatprep.subr.bf16.mxu0 0
    %1055 = vmatpush1.bf16.msra.mxu0 0
    %1056 = vmatprep.subr.bf16.mxu0 0
    %1057 = vmatpush1.bf16.msra.mxu0 0
    %1058 = vmatprep.subr.bf16.mxu0 0
    %1059 = vmatpush1.bf16.msra.mxu0 %v1039
    %1060 = vmatprep.subr.bf16.mxu0 0
    %1061 = vmatpush2.bf16.msra.mxu0 0
    %1062 = vmatprep.subr.bf16.mxu0 0
    %1063 = vmatpush2.bf16.msra.mxu0 0
    %1064 = vmatprep.subr.bf16.mxu0 0
    %1065 = vmatpush2.bf16.msra.mxu0 0
    %1066 = vmatprep.subr.bf16.mxu0 0
    %1067 = vmatpush2.bf16.msra.mxu0 0
    %1068 = vmatprep.subr.bf16.mxu0 0
    %1069 = vmatpush2.bf16.msra.mxu0 0
    %1070 = vmatprep.subr.bf16.mxu0 0
    %1071 = vmatpush2.bf16.msra.mxu0 0
    %1072 = vmatprep.subr.bf16.mxu0 0
    %1073 = vmatpush2.bf16.msra.mxu0 0
    %1074 = vmatprep.subr.bf16.mxu0 0
    %1075 = vmatpush2.bf16.msra.mxu0 0
    %1076 = vmatprep.mubr.bf16.mxu0 0
    %1077 = vmatmul.mubr.bf16.gmra.mxu0 %v1042
    %v1078 = vpop.f32.mrf.mxu0
    %v1079 = vadd.f32 %v1033, %v1078
    %v1080 = vpop.f32.mrf.mxu0
    %v1081 = vpop.f32.mrf.mxu0
    %v1082 = vpop.f32.mrf.mxu0
    %1083 = vdwg.mxu0
    %vm1084 = vcmp.ge.f32.partialorder %v1079, 0.0
    %v1085 = vstv %s1022
    %v1086 = vmul.f32 %v1085, %v1079
    %v1087 = vsel %vm1084, %v1079, %v1086
    %v1088 = vrot.slane %v1087, 4
    %v1089 = vadd.f32 %v1087, %v1088
    %v1090 = vrot.slane %v1089, 2
    %v1091 = vadd.f32 %v1089, %v1090
    %v1092 = vrot.slane %v1091, 1
    %v1093 = vadd.f32 %v1091, %v1092
    %v1094 = vmul.f32 %v1093, %v154
    %v1095 = vsub.f32 %v1087, %v1094
    %v1096 = vmul.f32 %v1095, %v1095
    %v1097 = vrot.slane %v1096, 4
    %v1098 = vadd.f32 %v1096, %v1097
    %v1099 = vrot.slane %v1098, 2
    %v1100 = vadd.f32 %v1098, %v1099
    %v1101 = vrot.slane %v1100, 1
    %v1102 = vadd.f32 %v1100, %v1101
    %v1103 = vmul.f32 %v1102, %v154
    %v1104 = vadd.f32 %v1103, 1e-05
    %v1105 = vrsqrt.pop %v1104
    %v1106 = vmul.f32 %v1095, %v1105
    %v1107 = vpack.c.bf16 %v1106, %v1106
    %s1108 = scalar_lea.vmem %s3, 128
    %v1109 = vld [vmem:[%s1108] sm:$0xf]
    %v1110 = vld [vmem:[%s1108 + $0x4] sm:$0xf]
    %v1111 = vld [vmem:[%s1108 + $0x8] sm:$0xf]
    %v1112 = vld [vmem:[%s1108 + $0xc] sm:$0xf]
    %v1113 = vld [vmem:[%s1108 + $0x10] sm:$0xf]
    %v1114 = vld [vmem:[%s1108 + $0x14] sm:$0xf]
    %v1115 = vld [vmem:[%s1108 + $0x18] sm:$0xf]
    %v1116 = vld [vmem:[%s1108 + $0x1c] sm:$0xf]
    %v1117 = vld [vmem:[%s1108 + $0x20] sm:$0xf]
    %v1118 = vld [vmem:[%s1108 + $0x24] sm:$0xf]
    %v1119 = vld [vmem:[%s1108 + $0x28] sm:$0xf]
    %v1120 = vld [vmem:[%s1108 + $0x2c] sm:$0xf]
    %v1121 = vld [vmem:[%s1108 + $0x30] sm:$0xf]
    %v1122 = vld [vmem:[%s1108 + $0x34] sm:$0xf]
    %v1123 = vld [vmem:[%s1108 + $0x38] sm:$0xf]
    %v1124 = vld [vmem:[%s1108 + $0x3c] sm:$0xf]
    %s1125 = scalar_lea.vmem %s4, 2
    %v1126 = vld [vmem:[%s1125] sm:$0x1]
    %v1128 = vlaneseq
    %v1129 = vshrl.u32 %v1128, 7
    %v1130 = vsub.s32 0, %v1129
    %v1131 = vrot.slane %v1126, %v1130
    %v1149 = vunpack.c.l.b16 %v1109
    %v1150 = vunpack.c.l.b16 %v1110
    %v1151 = vunpack.c.l.b16 %v1111
    %v1152 = vunpack.c.l.b16 %v1112
    %v1153 = vunpack.c.l.b16 %v1113
    %v1154 = vunpack.c.l.b16 %v1114
    %v1155 = vunpack.c.l.b16 %v1115
    %v1156 = vunpack.c.l.b16 %v1116
    %v1157 = vunpack.c.l.b16 %v1117
    %v1158 = vunpack.c.l.b16 %v1118
    %v1159 = vunpack.c.l.b16 %v1119
    %v1160 = vunpack.c.l.b16 %v1120
    %v1161 = vunpack.c.l.b16 %v1121
    %v1162 = vunpack.c.l.b16 %v1122
    %v1163 = vunpack.c.l.b16 %v1123
    %v1164 = vunpack.c.l.b16 %v1124
    %v1165 = vpack.c.b16 %v1150, %v1149
    %v1166 = vpack.c.b16 %v1152, %v1151
    %v1167 = vpack.c.b16 %v1154, %v1153
    %v1168 = vpack.c.b16 %v1156, %v1155
    %v1169 = vpack.c.b16 %v1158, %v1157
    %v1170 = vpack.c.b16 %v1160, %v1159
    %v1171 = vpack.c.b16 %v1162, %v1161
    %v1172 = vpack.c.b16 %v1164, %v1163
    %1181 = vmatprep.subr.bf16.mxu0 0
    %1182 = vmatpush1.bf16.msra.mxu0 %v1172
    %1183 = vmatprep.subr.bf16.mxu0 0
    %1184 = vmatpush1.bf16.msra.mxu0 %v1171
    %1185 = vmatprep.subr.bf16.mxu0 0
    %1186 = vmatpush1.bf16.msra.mxu0 %v1170
    %1187 = vmatprep.subr.bf16.mxu0 0
    %1188 = vmatpush1.bf16.msra.mxu0 %v1169
    %1189 = vmatprep.subr.bf16.mxu0 0
    %1190 = vmatpush1.bf16.msra.mxu0 %v1168
    %1191 = vmatprep.subr.bf16.mxu0 0
    %1192 = vmatpush1.bf16.msra.mxu0 %v1167
    %1193 = vmatprep.subr.bf16.mxu0 0
    %1194 = vmatpush1.bf16.msra.mxu0 %v1166
    %1195 = vmatprep.subr.bf16.mxu0 0
    %1196 = vmatpush1.bf16.msra.mxu0 %v1165
    %1197 = vmatprep.subr.bf16.mxu0 0
    %1198 = vmatpush2.bf16.msra.mxu0 0
    %1199 = vmatprep.subr.bf16.mxu0 0
    %1200 = vmatpush2.bf16.msra.mxu0 0
    %1201 = vmatprep.subr.bf16.mxu0 0
    %1202 = vmatpush2.bf16.msra.mxu0 0
    %1203 = vmatprep.subr.bf16.mxu0 0
    %1204 = vmatpush2.bf16.msra.mxu0 0
    %1205 = vmatprep.subr.bf16.mxu0 0
    %1206 = vmatpush2.bf16.msra.mxu0 0
    %1207 = vmatprep.subr.bf16.mxu0 0
    %1208 = vmatpush2.bf16.msra.mxu0 0
    %1209 = vmatprep.subr.bf16.mxu0 0
    %1210 = vmatpush2.bf16.msra.mxu0 0
    %1211 = vmatprep.subr.bf16.mxu0 0
    %1212 = vmatpush2.bf16.msra.mxu0 0
    %1213 = vmatprep.mubr.bf16.mxu0 0
    %1214 = vmatmul.mubr.bf16.gmra.mxu0 %v1107
    %v1215 = vpop.f32.mrf.mxu0
    %v1216 = vadd.f32 %v1131, %v1215
    %v1217 = vpop.f32.mrf.mxu0
    %v1218 = vpop.f32.mrf.mxu0
    %v1219 = vpop.f32.mrf.mxu0
    %1220 = vdwg.mxu0
    %v1221 = vadd.f32 %v746, %v1216
    %v1222 = vsel %vm280, %v1216, 0.0
    %v1223 = vrot.slane %v1222, 4
    %v1224 = vadd.f32 %v1222, %v1223
    %v1225 = vrot.slane %v1224, 2
    %v1226 = vadd.f32 %v1224, %v1225
    %v1227 = vrot.slane %v1226, 1
    %v1228 = vadd.f32 %v1226, %v1227
    %v1229 = vmul.f32 %v1228, %v154
    %v1230 = vsub.f32 %v1216, %v1229
    %v1231 = vmul.f32 %v1230, %v1230
    %v1232 = vsel %vm280, %v1231, 0.0
    %v1233 = vrot.slane %v1232, 4
    %v1234 = vadd.f32 %v1232, %v1233
    %v1235 = vrot.slane %v1234, 2
    %v1236 = vadd.f32 %v1234, %v1235
    %v1237 = vrot.slane %v1236, 1
    %v1238 = vadd.f32 %v1236, %v1237
    %v1239 = vmul.f32 %v1238, %v154
    %v1240 = vadd.f32 %v1239, 1e-05
    %v1241 = vrsqrt.pop %v1240
    %v1242 = vmul.f32 %v1230, %v1241
    %v1243 = vpack.c.bf16 %v1242, %v1242
    %s1244 = scalar_lea.vmem %s5, 128
    %v1245 = vld [vmem:[%s1244] sm:$0xff]
    %v1246 = vld [vmem:[%s1244 + $0x8] sm:$0xff]
    %v1247 = vld [vmem:[%s1244 + $0x10] sm:$0xff]
    %v1248 = vld [vmem:[%s1244 + $0x18] sm:$0xff]
    %v1249 = vld [vmem:[%s1244 + $0x20] sm:$0xff]
    %v1250 = vld [vmem:[%s1244 + $0x28] sm:$0xff]
    %v1251 = vld [vmem:[%s1244 + $0x30] sm:$0xff]
    %v1252 = vld [vmem:[%s1244 + $0x38] sm:$0xff]
    %s1253 = scalar_lea.vmem %s6, 4
    %v1254 = vld [vmem:[%s1253] sm:$0x3]
    %v1256 = vlaneseq
    %v1257 = vshrl.u32 %v1256, 7
    %v1258 = vsub.s32 0, %v1257
    %v1259 = vrot.slane %v1254, %v1258
    %v1260 = vlaneseq
    %v1261 = vshrl.u32 %v1260, 7
    %v1262 = vsub.s32 1, %v1261
    %v1263 = vrot.slane %v1254, %v1262
    %v1274 = vunpack.c.l.b16 %v1245
    %v1275 = vunpack.c.h.b16 %v1245
    %v1276 = vunpack.c.l.b16 %v1246
    %v1277 = vunpack.c.h.b16 %v1246
    %v1278 = vunpack.c.l.b16 %v1247
    %v1279 = vunpack.c.h.b16 %v1247
    %v1280 = vunpack.c.l.b16 %v1248
    %v1281 = vunpack.c.h.b16 %v1248
    %v1282 = vunpack.c.l.b16 %v1249
    %v1283 = vunpack.c.h.b16 %v1249
    %v1284 = vunpack.c.l.b16 %v1250
    %v1285 = vunpack.c.h.b16 %v1250
    %v1286 = vunpack.c.l.b16 %v1251
    %v1287 = vunpack.c.h.b16 %v1251
    %v1288 = vunpack.c.l.b16 %v1252
    %v1289 = vunpack.c.h.b16 %v1252
    %v1290 = vpack.c.b16 %v1276, %v1274
    %v1291 = vpack.c.b16 %v1277, %v1275
    %v1292 = vpack.c.b16 %v1280, %v1278
    %v1293 = vpack.c.b16 %v1281, %v1279
    %v1294 = vpack.c.b16 %v1284, %v1282
    %v1295 = vpack.c.b16 %v1285, %v1283
    %v1296 = vpack.c.b16 %v1288, %v1286
    %v1297 = vpack.c.b16 %v1289, %v1287
    %v1307 = vsel %vm280, %v1243, 0
    %1309 = vmatprep.subr.bf16.mxu0 0
    %1310 = vmatpush1.bf16.msra.mxu0 0
    %1311 = vmatprep.subr.bf16.mxu0 0
    %1312 = vmatpush1.bf16.msra.mxu0 0
    %1313 = vmatprep.subr.bf16.mxu0 0
    %1314 = vmatpush1.bf16.msra.mxu0 0
    %1315 = vmatprep.subr.bf16.mxu0 0
    %1316 = vmatpush1.bf16.msra.mxu0 0
    %1317 = vmatprep.subr.bf16.mxu0 %v1297
    %1318 = vmatpush1.bf16.msra.mxu0 %v1296
    %1319 = vmatprep.subr.bf16.mxu0 %v1295
    %1320 = vmatpush1.bf16.msra.mxu0 %v1294
    %1321 = vmatprep.subr.bf16.mxu0 %v1293
    %1322 = vmatpush1.bf16.msra.mxu0 %v1292
    %1323 = vmatprep.subr.bf16.mxu0 %v1291
    %1324 = vmatpush1.bf16.msra.mxu0 %v1290
    %1325 = vmatprep.subr.bf16.mxu0 0
    %1326 = vmatpush2.bf16.msra.mxu0 0
    %1327 = vmatprep.subr.bf16.mxu0 0
    %1328 = vmatpush2.bf16.msra.mxu0 0
    %1329 = vmatprep.subr.bf16.mxu0 0
    %1330 = vmatpush2.bf16.msra.mxu0 0
    %1331 = vmatprep.subr.bf16.mxu0 0
    %1332 = vmatpush2.bf16.msra.mxu0 0
    %1333 = vmatprep.subr.bf16.mxu0 0
    %1334 = vmatpush2.bf16.msra.mxu0 0
    %1335 = vmatprep.subr.bf16.mxu0 0
    %1336 = vmatpush2.bf16.msra.mxu0 0
    %1337 = vmatprep.subr.bf16.mxu0 0
    %1338 = vmatpush2.bf16.msra.mxu0 0
    %1339 = vmatprep.subr.bf16.mxu0 0
    %1340 = vmatpush2.bf16.msra.mxu0 0
    %1341 = vmatprep.mubr.bf16.mxu0 0
    %1342 = vmatmul.mubr.bf16.gmra.mxu0 %v1307
    %v1343 = vpop.f32.mrf.mxu0
    %v1344 = vadd.f32 %v1259, %v1343
    %v1345 = vpop.f32.mrf.mxu0
    %v1346 = vadd.f32 %v1263, %v1345
    %v1347 = vpop.f32.mrf.mxu0
    %v1348 = vpop.f32.mrf.mxu0
    %1349 = vdwg.mxu0
    %1351 = vrot.lane.b32.xlu0 %v1346, 2
    %v1352 = vpop.permute.xlu0 %1351
    %vm1354 = vcmask 23568
    %1355 = vst.msk [vmem:[%s16] sm:$0xff] %vm1354, %v1352
    %vm1356 = vcmp.ge.f32.partialorder %v1344, 0.0
    %v1357 = vstv %s1023
    %v1358 = vmul.f32 %v1357, %v1344
    %v1359 = vsel %vm1356, %v1344, %v1358
    %v1360 = vrot.slane %v1359, 4
    %v1361 = vadd.f32 %v1359, %v1360
    %v1362 = vrot.slane %v1361, 2
    %v1363 = vadd.f32 %v1361, %v1362
    %v1364 = vrot.slane %v1363, 1
    %v1365 = vadd.f32 %v1363, %v1364
    %v1366 = vmul.f32 %v1365, %v154
    %v1367 = vsub.f32 %v1359, %v1366
    %v1368 = vmul.f32 %v1367, %v1367
    %v1369 = vrot.slane %v1368, 4
    %v1370 = vadd.f32 %v1368, %v1369
    %v1371 = vrot.slane %v1370, 2
    %v1372 = vadd.f32 %v1370, %v1371
    %v1373 = vrot.slane %v1372, 1
    %v1374 = vadd.f32 %v1372, %v1373
    %v1375 = vmul.f32 %v1374, %v154
    %v1376 = vadd.f32 %v1375, 1e-05
    %v1377 = vrsqrt.pop %v1376
    %v1378 = vmul.f32 %v1367, %v1377
    %v1379 = vpack.c.bf16 %v1378, %v1378
    %s1380 = scalar_lea.vmem %s7, 128
    %v1381 = vld [vmem:[%s1380] sm:$0xf]
    %v1382 = vld [vmem:[%s1380 + $0x4] sm:$0xf]
    %v1383 = vld [vmem:[%s1380 + $0x8] sm:$0xf]
    %v1384 = vld [vmem:[%s1380 + $0xc] sm:$0xf]
    %v1385 = vld [vmem:[%s1380 + $0x10] sm:$0xf]
    %v1386 = vld [vmem:[%s1380 + $0x14] sm:$0xf]
    %v1387 = vld [vmem:[%s1380 + $0x18] sm:$0xf]
    %v1388 = vld [vmem:[%s1380 + $0x1c] sm:$0xf]
    %v1389 = vld [vmem:[%s1380 + $0x20] sm:$0xf]
    %v1390 = vld [vmem:[%s1380 + $0x24] sm:$0xf]
    %v1391 = vld [vmem:[%s1380 + $0x28] sm:$0xf]
    %v1392 = vld [vmem:[%s1380 + $0x2c] sm:$0xf]
    %v1393 = vld [vmem:[%s1380 + $0x30] sm:$0xf]
    %v1394 = vld [vmem:[%s1380 + $0x34] sm:$0xf]
    %v1395 = vld [vmem:[%s1380 + $0x38] sm:$0xf]
    %v1396 = vld [vmem:[%s1380 + $0x3c] sm:$0xf]
    %s1397 = scalar_lea.vmem %s8, 2
    %v1398 = vld [vmem:[%s1397] sm:$0x1]
    %v1400 = vlaneseq
    %v1401 = vshrl.u32 %v1400, 7
    %v1402 = vsub.s32 0, %v1401
    %v1403 = vrot.slane %v1398, %v1402
    %v1421 = vunpack.c.l.b16 %v1381
    %v1422 = vunpack.c.l.b16 %v1382
    %v1423 = vunpack.c.l.b16 %v1383
    %v1424 = vunpack.c.l.b16 %v1384
    %v1425 = vunpack.c.l.b16 %v1385
    %v1426 = vunpack.c.l.b16 %v1386
    %v1427 = vunpack.c.l.b16 %v1387
    %v1428 = vunpack.c.l.b16 %v1388
    %v1429 = vunpack.c.l.b16 %v1389
    %v1430 = vunpack.c.l.b16 %v1390
    %v1431 = vunpack.c.l.b16 %v1391
    %v1432 = vunpack.c.l.b16 %v1392
    %v1433 = vunpack.c.l.b16 %v1393
    %v1434 = vunpack.c.l.b16 %v1394
    %v1435 = vunpack.c.l.b16 %v1395
    %v1436 = vunpack.c.l.b16 %v1396
    %v1437 = vpack.c.b16 %v1422, %v1421
    %v1438 = vpack.c.b16 %v1424, %v1423
    %v1439 = vpack.c.b16 %v1426, %v1425
    %v1440 = vpack.c.b16 %v1428, %v1427
    %v1441 = vpack.c.b16 %v1430, %v1429
    %v1442 = vpack.c.b16 %v1432, %v1431
    %v1443 = vpack.c.b16 %v1434, %v1433
    %v1444 = vpack.c.b16 %v1436, %v1435
    %1453 = vmatprep.subr.bf16.mxu0 0
    %1454 = vmatpush1.bf16.msra.mxu0 %v1444
    %1455 = vmatprep.subr.bf16.mxu0 0
    %1456 = vmatpush1.bf16.msra.mxu0 %v1443
    %1457 = vmatprep.subr.bf16.mxu0 0
    %1458 = vmatpush1.bf16.msra.mxu0 %v1442
    %1459 = vmatprep.subr.bf16.mxu0 0
    %1460 = vmatpush1.bf16.msra.mxu0 %v1441
    %1461 = vmatprep.subr.bf16.mxu0 0
    %1462 = vmatpush1.bf16.msra.mxu0 %v1440
    %1463 = vmatprep.subr.bf16.mxu0 0
    %1464 = vmatpush1.bf16.msra.mxu0 %v1439
    %1465 = vmatprep.subr.bf16.mxu0 0
    %1466 = vmatpush1.bf16.msra.mxu0 %v1438
    %1467 = vmatprep.subr.bf16.mxu0 0
    %1468 = vmatpush1.bf16.msra.mxu0 %v1437
    %1469 = vmatprep.subr.bf16.mxu0 0
    %1470 = vmatpush2.bf16.msra.mxu0 0
    %1471 = vmatprep.subr.bf16.mxu0 0
    %1472 = vmatpush2.bf16.msra.mxu0 0
    %1473 = vmatprep.subr.bf16.mxu0 0
    %1474 = vmatpush2.bf16.msra.mxu0 0
    %1475 = vmatprep.subr.bf16.mxu0 0
    %1476 = vmatpush2.bf16.msra.mxu0 0
    %1477 = vmatprep.subr.bf16.mxu0 0
    %1478 = vmatpush2.bf16.msra.mxu0 0
    %1479 = vmatprep.subr.bf16.mxu0 0
    %1480 = vmatpush2.bf16.msra.mxu0 0
    %1481 = vmatprep.subr.bf16.mxu0 0
    %1482 = vmatpush2.bf16.msra.mxu0 0
    %1483 = vmatprep.subr.bf16.mxu0 0
    %1484 = vmatpush2.bf16.msra.mxu0 0
    %1485 = vmatprep.mubr.bf16.mxu0 0
    %1486 = vmatmul.mubr.bf16.gmra.mxu0 %v1379
    %v1487 = vpop.f32.mrf.mxu0
    %v1488 = vadd.f32 %v1403, %v1487
    %v1489 = vpop.f32.mrf.mxu0
    %v1490 = vpop.f32.mrf.mxu0
    %v1491 = vpop.f32.mrf.mxu0
    %1492 = vdwg.mxu0
    %s1493 = scalar_lea.vmem %s15, 16
    %1494 = vst.msk [vmem:[%s1493] sm:$0xff] %vm100, %v1488
    %v1495 = vmul.f32 %v1221, 0.33333334
    %1496 = vst.msk [vmem:[#allocation8] sm:$0xff] %vm280, %v1495
    %v1497 = vpack.c.bf16 %v1495, %v1495
    %v1498 = vld [vmem:[%s11] sm:$0xf]
    %v1499 = vld [vmem:[%s11 + $0x4] sm:$0xf]
    %v1500 = vld [vmem:[%s11 + $0x8] sm:$0xf]
    %v1501 = vld [vmem:[%s11 + $0xc] sm:$0xf]
    %v1502 = vld [vmem:[%s11 + $0x10] sm:$0xf]
    %v1503 = vld [vmem:[%s11 + $0x14] sm:$0xf]
    %v1504 = vld [vmem:[%s11 + $0x18] sm:$0xf]
    %v1505 = vld [vmem:[%s11 + $0x1c] sm:$0xf]
    %v1506 = vld [vmem:[%s12] sm:$0x1]
    %v1508 = vlaneseq
    %v1509 = vshrl.u32 %v1508, 7
    %v1510 = vsub.s32 0, %v1509
    %v1511 = vrot.slane %v1506, %v1510
    %v1521 = vunpack.c.l.b16 %v1498
    %v1522 = vunpack.c.l.b16 %v1499
    %v1523 = vunpack.c.l.b16 %v1500
    %v1524 = vunpack.c.l.b16 %v1501
    %v1525 = vunpack.c.l.b16 %v1502
    %v1526 = vunpack.c.l.b16 %v1503
    %v1527 = vunpack.c.l.b16 %v1504
    %v1528 = vunpack.c.l.b16 %v1505
    %v1529 = vpack.c.b16 %v1522, %v1521
    %v1530 = vpack.c.b16 %v1524, %v1523
    %v1531 = vpack.c.b16 %v1526, %v1525
    %v1532 = vpack.c.b16 %v1528, %v1527
    %v1538 = vsel %vm280, %v1497, 0
    %1540 = vmatprep.subr.bf16.mxu0 0
    %1541 = vmatpush1.bf16.msra.mxu0 0
    %1542 = vmatprep.subr.bf16.mxu0 0
    %1543 = vmatpush1.bf16.msra.mxu0 0
    %1544 = vmatprep.subr.bf16.mxu0 0
    %1545 = vmatpush1.bf16.msra.mxu0 0
    %1546 = vmatprep.subr.bf16.mxu0 0
    %1547 = vmatpush1.bf16.msra.mxu0 0
    %1548 = vmatprep.subr.bf16.mxu0 0
    %1549 = vmatpush1.bf16.msra.mxu0 %v1532
    %1550 = vmatprep.subr.bf16.mxu0 0
    %1551 = vmatpush1.bf16.msra.mxu0 %v1531
    %1552 = vmatprep.subr.bf16.mxu0 0
    %1553 = vmatpush1.bf16.msra.mxu0 %v1530
    %1554 = vmatprep.subr.bf16.mxu0 0
    %1555 = vmatpush1.bf16.msra.mxu0 %v1529
    %1556 = vmatprep.subr.bf16.mxu0 0
    %1557 = vmatpush2.bf16.msra.mxu0 0
    %1558 = vmatprep.subr.bf16.mxu0 0
    %1559 = vmatpush2.bf16.msra.mxu0 0
    %1560 = vmatprep.subr.bf16.mxu0 0
    %1561 = vmatpush2.bf16.msra.mxu0 0
    %1562 = vmatprep.subr.bf16.mxu0 0
    %1563 = vmatpush2.bf16.msra.mxu0 0
    %1564 = vmatprep.subr.bf16.mxu0 0
    %1565 = vmatpush2.bf16.msra.mxu0 0
    %1566 = vmatprep.subr.bf16.mxu0 0
    %1567 = vmatpush2.bf16.msra.mxu0 0
    %1568 = vmatprep.subr.bf16.mxu0 0
    %1569 = vmatpush2.bf16.msra.mxu0 0
    %1570 = vmatprep.subr.bf16.mxu0 0
    %1571 = vmatpush2.bf16.msra.mxu0 0
    %1572 = vmatprep.mubr.bf16.mxu0 0
    %1573 = vmatmul.mubr.bf16.gmra.mxu0 %v1538
    %v1574 = vpop.f32.mrf.mxu0
    %v1575 = vadd.f32 %v1511, %v1574
    %v1576 = vpop.f32.mrf.mxu0
    %v1577 = vpop.f32.mrf.mxu0
    %v1578 = vpop.f32.mrf.mxu0
    %1579 = vdwg.mxu0
    %v1580 = vsel %vm280, %v1575, 0.0
    %v1581 = vrot.slane %v1580, 4
    %v1582 = vadd.f32 %v1580, %v1581
    %v1583 = vrot.slane %v1582, 2
    %v1584 = vadd.f32 %v1582, %v1583
    %v1585 = vrot.slane %v1584, 1
    %v1586 = vadd.f32 %v1584, %v1585
    %v1587 = vmul.f32 %v1586, %v154
    %v1588 = vsub.f32 %v1575, %v1587
    %v1589 = vmul.f32 %v1588, %v1588
    %v1590 = vsel %vm280, %v1589, 0.0
    %v1591 = vrot.slane %v1590, 4
    %v1592 = vadd.f32 %v1590, %v1591
    %v1593 = vrot.slane %v1592, 2
    %v1594 = vadd.f32 %v1592, %v1593
    %v1595 = vrot.slane %v1594, 1
    %v1596 = vadd.f32 %v1594, %v1595
    %v1597 = vmul.f32 %v1596, %v154
    %v1598 = vadd.f32 %v1597, 1e-05
    %v1599 = vrsqrt.pop %v1598
    %v1600 = vmul.f32 %v1588, %v1599
    %v1601 = vpack.c.bf16 %v1600, %v1600
    %v1602 = vld [vmem:[%s13] sm:$0xf]
    %v1603 = vld [vmem:[%s13 + $0x4] sm:$0xf]
    %v1604 = vld [vmem:[%s13 + $0x8] sm:$0xf]
    %v1605 = vld [vmem:[%s13 + $0xc] sm:$0xf]
    %v1606 = vld [vmem:[%s13 + $0x10] sm:$0xf]
    %v1607 = vld [vmem:[%s13 + $0x14] sm:$0xf]
    %v1608 = vld [vmem:[%s13 + $0x18] sm:$0xf]
    %v1609 = vld [vmem:[%s13 + $0x1c] sm:$0xf]
    %v1610 = vld [vmem:[#allocation2] sm:$0x1]
    %v1612 = vlaneseq
    %v1613 = vshrl.u32 %v1612, 7
    %v1614 = vsub.s32 0, %v1613
    %v1615 = vrot.slane %v1610, %v1614
    %v1625 = vunpack.c.l.b16 %v1602
    %v1626 = vunpack.c.l.b16 %v1603
    %v1627 = vunpack.c.l.b16 %v1604
    %v1628 = vunpack.c.l.b16 %v1605
    %v1629 = vunpack.c.l.b16 %v1606
    %v1630 = vunpack.c.l.b16 %v1607
    %v1631 = vunpack.c.l.b16 %v1608
    %v1632 = vunpack.c.l.b16 %v1609
    %v1633 = vpack.c.b16 %v1626, %v1625
    %v1634 = vpack.c.b16 %v1628, %v1627
    %v1635 = vpack.c.b16 %v1630, %v1629
    %v1636 = vpack.c.b16 %v1632, %v1631
    %v1642 = vsel %vm280, %v1601, 0
    %1644 = vmatprep.subr.bf16.mxu0 0
    %1645 = vmatpush1.bf16.msra.mxu0 0
    %1646 = vmatprep.subr.bf16.mxu0 0
    %1647 = vmatpush1.bf16.msra.mxu0 0
    %1648 = vmatprep.subr.bf16.mxu0 0
    %1649 = vmatpush1.bf16.msra.mxu0 0
    %1650 = vmatprep.subr.bf16.mxu0 0
    %1651 = vmatpush1.bf16.msra.mxu0 0
    %1652 = vmatprep.subr.bf16.mxu0 0
    %1653 = vmatpush1.bf16.msra.mxu0 %v1636
    %1654 = vmatprep.subr.bf16.mxu0 0
    %1655 = vmatpush1.bf16.msra.mxu0 %v1635
    %1656 = vmatprep.subr.bf16.mxu0 0
    %1657 = vmatpush1.bf16.msra.mxu0 %v1634
    %1658 = vmatprep.subr.bf16.mxu0 0
    %1659 = vmatpush1.bf16.msra.mxu0 %v1633
    %1660 = vmatprep.subr.bf16.mxu0 0
    %1661 = vmatpush2.bf16.msra.mxu0 0
    %1662 = vmatprep.subr.bf16.mxu0 0
    %1663 = vmatpush2.bf16.msra.mxu0 0
    %1664 = vmatprep.subr.bf16.mxu0 0
    %1665 = vmatpush2.bf16.msra.mxu0 0
    %1666 = vmatprep.subr.bf16.mxu0 0
    %1667 = vmatpush2.bf16.msra.mxu0 0
    %1668 = vmatprep.subr.bf16.mxu0 0
    %1669 = vmatpush2.bf16.msra.mxu0 0
    %1670 = vmatprep.subr.bf16.mxu0 0
    %1671 = vmatpush2.bf16.msra.mxu0 0
    %1672 = vmatprep.subr.bf16.mxu0 0
    %1673 = vmatpush2.bf16.msra.mxu0 0
    %1674 = vmatprep.subr.bf16.mxu0 0
    %1675 = vmatpush2.bf16.msra.mxu0 0
    %1676 = vmatprep.mubr.bf16.mxu0 0
    %1677 = vmatmul.mubr.bf16.gmra.mxu0 %v1642
    %v1678 = vpop.f32.mrf.mxu0
    %v1679 = vadd.f32 %v1615, %v1678
    %v1680 = vpop.f32.mrf.mxu0
    %v1681 = vpop.f32.mrf.mxu0
    %v1682 = vpop.f32.mrf.mxu0
    %1683 = vdwg.mxu0
    %1685 = vrot.lane.b32.xlu0 %v1679, 3
    %v1686 = vpop.permute.xlu0 %1685
    %vm1688 = vcmask 31768
    %1689 = vst.msk [vmem:[%s16] sm:$0xff] %vm1688, %v1686
    // Predicated region
    $region70: #{_lambda_.1} parent=1 // pred_check
      _
    $region71: #{_lambda_.1} parent=1 // pred_check_branch
      %1691 = sbr.rel (0) target = $region73
    $region72: #{_lambda_.1} parent=1 // pred_region
      _
    $region73: #{_lambda_.1} parent=1 // pred_fallthru
      _
    // Predicated region
    $region74: #{_lambda_.1} parent=1 // pred_check
      _
    $region75: #{_lambda_.1} parent=1 // pred_check_branch
      %1693 = sbr.rel (0) target = $region77
    $region76: #{_lambda_.1} parent=1 // pred_region
      _
    $region77: #{_lambda_.1} parent=1 // pred_fallthru
      _
    // Predicated region
    $region78: #{_lambda_.1} parent=1 // pred_check
      _
    $region79: #{_lambda_.1} parent=1 // pred_check_branch
      %1695 = sbr.rel (0) target = $region81
    $region80: #{_lambda_.1} parent=1 // pred_region
      %s1697 = ssub.s32 128, 128
      %1698 = vsyncadd [#allocation4], %s1697
      %s1700 = sshll.u32 [#allocation8], 4
      %s1701 = int_to_ptr.vmem [resolvable:$true] %s1700
      %1703 = dma.vmem_to_hbm [thread:$0]  %s1701, 128, %s17, [#allocation4]
    $region81: #{_lambda_.1} parent=1 // pred_fallthru
      _
    // Predicated region
    $region82: #{_lambda_.1} parent=1 // pred_check
      _
    $region83: #{_lambda_.1} parent=1 // pred_check_branch
      %1705 = sbr.rel (0) target = $region85
    $region84: #{_lambda_.1} parent=1 // pred_region
      _
    $region85: #{_lambda_.1} parent=1 // pred_fallthru
      _
    // Predicated region
    $region86: #{_lambda_.1} parent=1 // pred_check
      _
    $region87: #{_lambda_.1} parent=1 // pred_check_branch
      %1707 = sbr.rel (0) target = $region89
    $region88: #{_lambda_.1} parent=1 // pred_region
      _
    $region89: #{_lambda_.1} parent=1 // pred_fallthru
      _
    // Predicated region
    $region90: #{_lambda_.1} parent=1 // pred_check
      _
    $region91: #{_lambda_.1} parent=1 // pred_check_branch
      %1709 = sbr.rel (0) target = $region93
    $region92: #{_lambda_.1} parent=1 // pred_region
      %1710 = dma.done [#allocation4], 128
    $region93: #{_lambda_.1} parent=1 // pred_fallthru
      _
    %1711 = vsyncpa [#allocation4], 1
    %1712 = vsyncpa [#allocation5], 1
    %1713 = vsyncpa [#allocation7], 1

</llo_original>
